<compile_context>
chip_gen: v5e
topology: v5e:2x2
jax: 0.10.0
libtpu: 0.0.40
codegen_flags: <defaults>
</compile_context>

<pallas_src>
import numpy as np

import jax
import jax.numpy as jnp
from jax.experimental import pallas as pl
from jax.experimental.pallas import tpu as pltpu


KSIZE = 3
CHANNEL_PLAN = [(3, 16), (16, 32), (32, 64), (64, 9)]
CHUNK = 128  # spatial (lane) chunk per MXU dot; must be >= (KSIZE-1)*(W+1)


def _round_up(x, m):
    return (x + m - 1) // m * m


def _make_fused_kernel(img_h, img_w, n_layers, cout_final,
                       ksize=KSIZE, chunk=CHUNK):
    hw = img_h * img_w
    h_out = img_h - n_layers * (ksize - 1)
    w_out = img_w - n_layers * (ksize - 1)
    taps = [ki * img_w + kj for ki in range(ksize) for kj in range(ksize)]
    assert chunk >= max(taps), "chunk must cover the largest tap shift"

    def conv_layer(act, w_ref, b_ref, apply_relu):
        """act: (Cin_pad, hw) f32  ->  (Cout_pad, hw) f32."""
        cin = act.shape[0]
        wmat = w_ref[...]                                   # (Cout_pad, 9*Cin_pad) bf16
        bias = b_ref[...]                                   # (Cout_pad, 1) f32
        # bf16 once per layer + vreg-aligned zero tail so every tap window is a
        # plain static lane slice (no wrap-around, no unaligned concat).
        act_b = jnp.concatenate(
            [act.astype(jnp.bfloat16),
             jnp.zeros((cin, chunk), jnp.bfloat16)], axis=1)  # (cin, hw+chunk)
        outs = []
        for j0 in range(0, hw, chunk):
            # im2col: 9 shifted windows stacked along K (sublane offsets are
            # multiples of Cin_pad >= 8, so the stack stays tile-aligned).
            lhs = jnp.concatenate(
                [act_b[:, j0 + s: j0 + s + chunk] for s in taps], axis=0)
            acc = jnp.dot(wmat, lhs, preferred_element_type=jnp.float32) + bias
            if apply_relu:
                acc = jnp.maximum(acc, 0.0)
            outs.append(acc)
        return jnp.concatenate(outs, axis=1)                # (Cout_pad, hw) f32

    def kernel(x_ref, *refs):
        o_ref = refs[-1]
        wb = refs[:-1]                                      # w1,b1,...,w4,b4
        act = x_ref[0]                                      # (Cin0_pad, hw) f32
        for l in range(n_layers):
            act = conv_layer(act, wb[2 * l], wb[2 * l + 1],
                             apply_relu=(l < n_layers - 1))
        # Extract the valid conv region, channel-major, directly into the output
        # block (one small masked store per output row of the image).
        for hh in range(h_out):
            o_ref[0, :, hh * w_out:(hh + 1) * w_out] = \
                act[:cout_final, hh * img_w: hh * img_w + w_out]

    return kernel


def init_params(key, kernel_size=KSIZE):
    """PyTorch-style Conv2d init, weights in (Cout, Cin, KH, KW)."""
    params = []
    for idx, (cin, cout) in enumerate(CHANNEL_PLAN):
        kw_, kb_ = jax.random.split(jax.random.fold_in(key, idx))
        fan_in = cin * kernel_size * kernel_size
        bound = 1.0 / float(np.sqrt(fan_in))
        wgt = jax.random.uniform(kw_, (cout, cin, kernel_size, kernel_size),
                                 jnp.float32, -bound, bound)
        b = jax.random.uniform(kb_, (cout,), jnp.float32, -bound, bound)
        params.append((wgt, b))
    return params


def preformat_params(params):
    """ONCE at init: (Cout,Cin,KH,KW) -> bf16 (Cout_pad, KH*KW*Cin_pad) + f32 bias col.

    K ordering is (ki, kj, cin) to match the kernel's tap stacking; padded
    channels / output rows carry zero weights so they can never contaminate."""
    fmt = []
    for wgt, b in params:
        cout, cin, kh, kw = wgt.shape
        cout_pad = _round_up(cout, 8)       # 9 -> 16 for the final layer
        cin_pad = _round_up(cin, 8)         # 3 -> 8 for the input layer
        wk = jnp.transpose(wgt, (0, 2, 3, 1))                    # (Cout, KH, KW, Cin)
        wk = jnp.pad(wk, ((0, cout_pad - cout), (0, 0), (0, 0),
                          (0, cin_pad - cin)))
        wmat = wk.reshape(cout_pad, kh * kw * cin_pad).astype(jnp.bfloat16)
        bcol = jnp.pad(b, (0, cout_pad - cout)).reshape(cout_pad, 1)
        fmt.append((wmat, bcol.astype(jnp.float32)))
    return fmt


def model_forward(fmt_params, image_nchw):
    """conv1->relu->conv2->relu->conv3->relu->conv4 (no final relu), NCHW in/out."""
    n, c, h, w = image_nchw.shape
    hw = h * w
    n_layers = len(fmt_params)
    cout_final = CHANNEL_PLAN[-1][1]
    h_out = h - n_layers * (KSIZE - 1)
    w_out = w - n_layers * (KSIZE - 1)
    assert h_out > 0 and w_out > 0 and hw % CHUNK == 0

    # Only wrapper-side work: a free metadata reshape (stays channel-major) and a
    # tiny zero-pad of Cin 3 -> 8 so in-kernel K-stacking stays sublane-aligned.
    cin_pad = _round_up(c, 8)
    x = image_nchw.reshape(n, c, hw)
    if cin_pad != c:
        x = jnp.pad(x, ((0, 0), (0, cin_pad - c), (0, 0)))

    args = [x]
    in_specs = [pl.BlockSpec((1, cin_pad, hw), lambda b: (b, 0, 0))]
    for wmat, bcol in fmt_params:
        args += [wmat, bcol]
        in_specs += [pl.BlockSpec(wmat.shape, lambda b: (0, 0)),
                     pl.BlockSpec(bcol.shape, lambda b: (0, 0))]

    kernel = _make_fused_kernel(h, w, n_layers, cout_final)

    out = pl.pallas_call(
        kernel,
        out_shape=jax.ShapeDtypeStruct((n, cout_final, h_out * w_out),
                                       jnp.float32),
        grid_spec=pltpu.PrefetchScalarGridSpec(
            num_scalar_prefetch=0,
            grid=(n,),                                   # one image per grid step
            in_specs=in_specs,
            out_specs=pl.BlockSpec((1, cout_final, h_out * w_out),
                                   lambda b: (b, 0, 0)),
        ),
        compiler_params=pltpu.CompilerParams(
            dimension_semantics=("parallel",)),          # both TCs on v7x
    )(*args)

    return out.reshape(n, cout_final, h_out, w_out)      # free reshape -> NCHW


def reference_forward(params, x):
    """Plain-JAX f32 reference (same semantics as PyTorch Conv2d, valid, stride 1)."""
    n_layers = len(params)
    for i, (wgt, b) in enumerate(params):
        x = jax.lax.conv_general_dilated(
            x, wgt, window_strides=(1, 1), padding="VALID",
            dimension_numbers=("NCHW", "OIHW", "NCHW"),
            precision=jax.lax.Precision.HIGHEST)
        x = x + b[None, :, None, None]
        if i < n_layers - 1:
            x = jnp.maximum(x, 0.0)
    return x


if __name__ == "__main__":
    key = jax.random.PRNGKey(0)
    k_img, k_par = jax.random.split(key)
    image = jax.random.normal(k_img, (2, 3, 16, 16), jnp.float32)  # NCHW
    params = init_params(k_par)
    fmt_params = preformat_params(params)

    out = jax.jit(model_forward)(fmt_params, image)
    jax.block_until_ready(out)
    assert out.shape == (2, 9, 8, 8), out.shape

    ref = reference_forward(params, image)
    # bf16 MXU operands (f32 accumulation) across 4 layers -> relaxed tolerance.
    np.testing.assert_allclose(np.asarray(out), np.asarray(ref),
                               rtol=2e-2, atol=2e-2)
    print("KERNEL_OK")
</pallas_src>

<mosaic_0001>
module attributes {stable_mosaic.version = 11 : i64} {
  func.func @kernel(%arg0: i32, %arg1: memref<1x8x256xf32, #tpu.memory_space<vmem>>, %arg2: memref<16x72xbf16, #tpu.memory_space<vmem>>, %arg3: memref<16x1xf32, #tpu.memory_space<vmem>>, %arg4: memref<32x144xbf16, #tpu.memory_space<vmem>>, %arg5: memref<32x1xf32, #tpu.memory_space<vmem>>, %arg6: memref<64x288xbf16, #tpu.memory_space<vmem>>, %arg7: memref<64x1xf32, #tpu.memory_space<vmem>>, %arg8: memref<16x576xbf16, #tpu.memory_space<vmem>>, %arg9: memref<16x1xf32, #tpu.memory_space<vmem>>, %arg10: memref<1x9x64xf32, #tpu.memory_space<vmem>>) attributes {dimension_semantics = [#tpu.dimension_semantics<parallel>], iteration_bounds = array<i64: 2>, scalar_prefetch = 0 : i64, scratch_operands = 0 : i64, tpu.core_type = #tpu.core_type<tc>, window_params = [{transform_indices = @transform_0, window_bounds = array<i64: 1, 8, 256>}, {pipeline_mode = #tpu.pipeline_mode<synchronous>, transform_indices = @transform_1, window_bounds = array<i64: 16, 72>}, {pipeline_mode = #tpu.pipeline_mode<synchronous>, transform_indices = @transform_2, window_bounds = array<i64: 16, 1>}, {pipeline_mode = #tpu.pipeline_mode<synchronous>, transform_indices = @transform_3, window_bounds = array<i64: 32, 144>}, {pipeline_mode = #tpu.pipeline_mode<synchronous>, transform_indices = @transform_4, window_bounds = array<i64: 32, 1>}, {pipeline_mode = #tpu.pipeline_mode<synchronous>, transform_indices = @transform_5, window_bounds = array<i64: 64, 288>}, {pipeline_mode = #tpu.pipeline_mode<synchronous>, transform_indices = @transform_6, window_bounds = array<i64: 64, 1>}, {pipeline_mode = #tpu.pipeline_mode<synchronous>, transform_indices = @transform_7, window_bounds = array<i64: 16, 576>}, {pipeline_mode = #tpu.pipeline_mode<synchronous>, transform_indices = @transform_8, window_bounds = array<i64: 16, 1>}, {transform_indices = @transform_9, window_bounds = array<i64: 1, 9, 64>}]} {
    %c0 = arith.constant 0 : index
    %c0_0 = arith.constant 0 : index
    %c0_1 = arith.constant 0 : index
    %0 = vector.load %arg1[%c0, %c0_0, %c0_1] : memref<1x8x256xf32, #tpu.memory_space<vmem>>, vector<1x8x256xf32>
    %1 = vector.shape_cast %0 : vector<1x8x256xf32> to vector<8x256xf32>
    %c0_2 = arith.constant 0 : index
    %c0_3 = arith.constant 0 : index
    %2 = vector.load %arg2[%c0_2, %c0_3] : memref<16x72xbf16, #tpu.memory_space<vmem>>, vector<16x72xbf16>
    %c0_4 = arith.constant 0 : index
    %c0_5 = arith.constant 0 : index
    %3 = vector.load %arg3[%c0_4, %c0_5] : memref<16x1xf32, #tpu.memory_space<vmem>>, vector<16x1xf32>
    %4 = arith.truncf %1 : vector<8x256xf32> to vector<8x256xbf16>
    %cst = arith.constant 0.000000e+00 : bf16
    %5 = vector.broadcast %cst : bf16 to vector<8x128xbf16>
    %6 = tpu.concatenate %4, %5 in 1 : vector<8x256xbf16>, vector<8x128xbf16> -> vector<8x384xbf16>
    %7 = vector.extract_strided_slice %6 {offsets = [0, 0], sizes = [8, 128], strides = [1, 1]} : vector<8x384xbf16> to vector<8x128xbf16>
    %8 = vector.extract_strided_slice %6 {offsets = [0, 1], sizes = [8, 128], strides = [1, 1]} : vector<8x384xbf16> to vector<8x128xbf16>
    %9 = vector.extract_strided_slice %6 {offsets = [0, 2], sizes = [8, 128], strides = [1, 1]} : vector<8x384xbf16> to vector<8x128xbf16>
    %10 = vector.extract_strided_slice %6 {offsets = [0, 16], sizes = [8, 128], strides = [1, 1]} : vector<8x384xbf16> to vector<8x128xbf16>
    %11 = vector.extract_strided_slice %6 {offsets = [0, 17], sizes = [8, 128], strides = [1, 1]} : vector<8x384xbf16> to vector<8x128xbf16>
    %12 = vector.extract_strided_slice %6 {offsets = [0, 18], sizes = [8, 128], strides = [1, 1]} : vector<8x384xbf16> to vector<8x128xbf16>
    %13 = vector.extract_strided_slice %6 {offsets = [0, 32], sizes = [8, 128], strides = [1, 1]} : vector<8x384xbf16> to vector<8x128xbf16>
    %14 = vector.extract_strided_slice %6 {offsets = [0, 33], sizes = [8, 128], strides = [1, 1]} : vector<8x384xbf16> to vector<8x128xbf16>
    %15 = vector.extract_strided_slice %6 {offsets = [0, 34], sizes = [8, 128], strides = [1, 1]} : vector<8x384xbf16> to vector<8x128xbf16>
    %16 = tpu.concatenate %7, %8, %9, %10, %11, %12, %13, %14, %15 in 0 : vector<8x128xbf16>, vector<8x128xbf16>, vector<8x128xbf16>, vector<8x128xbf16>, vector<8x128xbf16>, vector<8x128xbf16>, vector<8x128xbf16>, vector<8x128xbf16>, vector<8x128xbf16> -> vector<72x128xbf16>
    %cst_6 = arith.constant dense<0.000000e+00> : vector<16x128xf32>
    %17 = tpu.matmul %2, %16, %cst_6 {dimension_numbers = #tpu.dot_dimension_numbers<[1], [0], [0], [1], [0, 0, 1, 1], [], []>} : vector<16x72xbf16>, vector<72x128xbf16>, vector<16x128xf32> -> vector<16x128xf32>
    %18 = vector.broadcast %3 : vector<16x1xf32> to vector<16x128xf32>
    %19 = arith.addf %17, %18 : vector<16x128xf32>
    %cst_7 = arith.constant 0.000000e+00 : f32
    %20 = vector.broadcast %cst_7 : f32 to vector<16x128xf32>
    %21 = arith.maximumf %19, %20 : vector<16x128xf32>
    %22 = vector.extract_strided_slice %6 {offsets = [0, 128], sizes = [8, 128], strides = [1, 1]} : vector<8x384xbf16> to vector<8x128xbf16>
    %23 = vector.extract_strided_slice %6 {offsets = [0, 129], sizes = [8, 128], strides = [1, 1]} : vector<8x384xbf16> to vector<8x128xbf16>
    %24 = vector.extract_strided_slice %6 {offsets = [0, 130], sizes = [8, 128], strides = [1, 1]} : vector<8x384xbf16> to vector<8x128xbf16>
    %25 = vector.extract_strided_slice %6 {offsets = [0, 144], sizes = [8, 128], strides = [1, 1]} : vector<8x384xbf16> to vector<8x128xbf16>
    %26 = vector.extract_strided_slice %6 {offsets = [0, 145], sizes = [8, 128], strides = [1, 1]} : vector<8x384xbf16> to vector<8x128xbf16>
    %27 = vector.extract_strided_slice %6 {offsets = [0, 146], sizes = [8, 128], strides = [1, 1]} : vector<8x384xbf16> to vector<8x128xbf16>
    %28 = vector.extract_strided_slice %6 {offsets = [0, 160], sizes = [8, 128], strides = [1, 1]} : vector<8x384xbf16> to vector<8x128xbf16>
    %29 = vector.extract_strided_slice %6 {offsets = [0, 161], sizes = [8, 128], strides = [1, 1]} : vector<8x384xbf16> to vector<8x128xbf16>
    %30 = vector.extract_strided_slice %6 {offsets = [0, 162], sizes = [8, 128], strides = [1, 1]} : vector<8x384xbf16> to vector<8x128xbf16>
    %31 = tpu.concatenate %22, %23, %24, %25, %26, %27, %28, %29, %30 in 0 : vector<8x128xbf16>, vector<8x128xbf16>, vector<8x128xbf16>, vector<8x128xbf16>, vector<8x128xbf16>, vector<8x128xbf16>, vector<8x128xbf16>, vector<8x128xbf16>, vector<8x128xbf16> -> vector<72x128xbf16>
    %cst_8 = arith.constant dense<0.000000e+00> : vector<16x128xf32>
    %32 = tpu.matmul %2, %31, %cst_8 {dimension_numbers = #tpu.dot_dimension_numbers<[1], [0], [0], [1], [0, 0, 1, 1], [], []>} : vector<16x72xbf16>, vector<72x128xbf16>, vector<16x128xf32> -> vector<16x128xf32>
    %33 = vector.broadcast %3 : vector<16x1xf32> to vector<16x128xf32>
    %34 = arith.addf %32, %33 : vector<16x128xf32>
    %cst_9 = arith.constant 0.000000e+00 : f32
    %35 = vector.broadcast %cst_9 : f32 to vector<16x128xf32>
    %36 = arith.maximumf %34, %35 : vector<16x128xf32>
    %37 = tpu.concatenate %21, %36 in 1 : vector<16x128xf32>, vector<16x128xf32> -> vector<16x256xf32>
    %c0_10 = arith.constant 0 : index
    %c0_11 = arith.constant 0 : index
    %38 = vector.load %arg4[%c0_10, %c0_11] : memref<32x144xbf16, #tpu.memory_space<vmem>>, vector<32x144xbf16>
    %c0_12 = arith.constant 0 : index
    %c0_13 = arith.constant 0 : index
    %39 = vector.load %arg5[%c0_12, %c0_13] : memref<32x1xf32, #tpu.memory_space<vmem>>, vector<32x1xf32>
    %40 = arith.truncf %37 : vector<16x256xf32> to vector<16x256xbf16>
    %cst_14 = arith.constant 0.000000e+00 : bf16
    %41 = vector.broadcast %cst_14 : bf16 to vector<16x128xbf16>
    %42 = tpu.concatenate %40, %41 in 1 : vector<16x256xbf16>, vector<16x128xbf16> -> vector<16x384xbf16>
    %43 = vector.extract_strided_slice %42 {offsets = [0, 0], sizes = [16, 128], strides = [1, 1]} : vector<16x384xbf16> to vector<16x128xbf16>
    %44 = vector.extract_strided_slice %42 {offsets = [0, 1], sizes = [16, 128], strides = [1, 1]} : vector<16x384xbf16> to vector<16x128xbf16>
    %45 = vector.extract_strided_slice %42 {offsets = [0, 2], sizes = [16, 128], strides = [1, 1]} : vector<16x384xbf16> to vector<16x128xbf16>
    %46 = vector.extract_strided_slice %42 {offsets = [0, 16], sizes = [16, 128], strides = [1, 1]} : vector<16x384xbf16> to vector<16x128xbf16>
    %47 = vector.extract_strided_slice %42 {offsets = [0, 17], sizes = [16, 128], strides = [1, 1]} : vector<16x384xbf16> to vector<16x128xbf16>
    %48 = vector.extract_strided_slice %42 {offsets = [0, 18], sizes = [16, 128], strides = [1, 1]} : vector<16x384xbf16> to vector<16x128xbf16>
    %49 = vector.extract_strided_slice %42 {offsets = [0, 32], sizes = [16, 128], strides = [1, 1]} : vector<16x384xbf16> to vector<16x128xbf16>
    %50 = vector.extract_strided_slice %42 {offsets = [0, 33], sizes = [16, 128], strides = [1, 1]} : vector<16x384xbf16> to vector<16x128xbf16>
    %51 = vector.extract_strided_slice %42 {offsets = [0, 34], sizes = [16, 128], strides = [1, 1]} : vector<16x384xbf16> to vector<16x128xbf16>
    %52 = tpu.concatenate %43, %44, %45, %46, %47, %48, %49, %50, %51 in 0 : vector<16x128xbf16>, vector<16x128xbf16>, vector<16x128xbf16>, vector<16x128xbf16>, vector<16x128xbf16>, vector<16x128xbf16>, vector<16x128xbf16>, vector<16x128xbf16>, vector<16x128xbf16> -> vector<144x128xbf16>
    %cst_15 = arith.constant dense<0.000000e+00> : vector<32x128xf32>
    %53 = tpu.matmul %38, %52, %cst_15 {dimension_numbers = #tpu.dot_dimension_numbers<[1], [0], [0], [1], [0, 0, 1, 1], [], []>} : vector<32x144xbf16>, vector<144x128xbf16>, vector<32x128xf32> -> vector<32x128xf32>
    %54 = vector.broadcast %39 : vector<32x1xf32> to vector<32x128xf32>
    %55 = arith.addf %53, %54 : vector<32x128xf32>
    %cst_16 = arith.constant 0.000000e+00 : f32
    %56 = vector.broadcast %cst_16 : f32 to vector<32x128xf32>
    %57 = arith.maximumf %55, %56 : vector<32x128xf32>
    %58 = vector.extract_strided_slice %42 {offsets = [0, 128], sizes = [16, 128], strides = [1, 1]} : vector<16x384xbf16> to vector<16x128xbf16>
    %59 = vector.extract_strided_slice %42 {offsets = [0, 129], sizes = [16, 128], strides = [1, 1]} : vector<16x384xbf16> to vector<16x128xbf16>
    %60 = vector.extract_strided_slice %42 {offsets = [0, 130], sizes = [16, 128], strides = [1, 1]} : vector<16x384xbf16> to vector<16x128xbf16>
    %61 = vector.extract_strided_slice %42 {offsets = [0, 144], sizes = [16, 128], strides = [1, 1]} : vector<16x384xbf16> to vector<16x128xbf16>
    %62 = vector.extract_strided_slice %42 {offsets = [0, 145], sizes = [16, 128], strides = [1, 1]} : vector<16x384xbf16> to vector<16x128xbf16>
    %63 = vector.extract_strided_slice %42 {offsets = [0, 146], sizes = [16, 128], strides = [1, 1]} : vector<16x384xbf16> to vector<16x128xbf16>
    %64 = vector.extract_strided_slice %42 {offsets = [0, 160], sizes = [16, 128], strides = [1, 1]} : vector<16x384xbf16> to vector<16x128xbf16>
    %65 = vector.extract_strided_slice %42 {offsets = [0, 161], sizes = [16, 128], strides = [1, 1]} : vector<16x384xbf16> to vector<16x128xbf16>
    %66 = vector.extract_strided_slice %42 {offsets = [0, 162], sizes = [16, 128], strides = [1, 1]} : vector<16x384xbf16> to vector<16x128xbf16>
    %67 = tpu.concatenate %58, %59, %60, %61, %62, %63, %64, %65, %66 in 0 : vector<16x128xbf16>, vector<16x128xbf16>, vector<16x128xbf16>, vector<16x128xbf16>, vector<16x128xbf16>, vector<16x128xbf16>, vector<16x128xbf16>, vector<16x128xbf16>, vector<16x128xbf16> -> vector<144x128xbf16>
    %cst_17 = arith.constant dense<0.000000e+00> : vector<32x128xf32>
    %68 = tpu.matmul %38, %67, %cst_17 {dimension_numbers = #tpu.dot_dimension_numbers<[1], [0], [0], [1], [0, 0, 1, 1], [], []>} : vector<32x144xbf16>, vector<144x128xbf16>, vector<32x128xf32> -> vector<32x128xf32>
    %69 = vector.broadcast %39 : vector<32x1xf32> to vector<32x128xf32>
    %70 = arith.addf %68, %69 : vector<32x128xf32>
    %cst_18 = arith.constant 0.000000e+00 : f32
    %71 = vector.broadcast %cst_18 : f32 to vector<32x128xf32>
    %72 = arith.maximumf %70, %71 : vector<32x128xf32>
    %73 = tpu.concatenate %57, %72 in 1 : vector<32x128xf32>, vector<32x128xf32> -> vector<32x256xf32>
    %c0_19 = arith.constant 0 : index
    %c0_20 = arith.constant 0 : index
    %74 = vector.load %arg6[%c0_19, %c0_20] : memref<64x288xbf16, #tpu.memory_space<vmem>>, vector<64x288xbf16>
    %c0_21 = arith.constant 0 : index
    %c0_22 = arith.constant 0 : index
    %75 = vector.load %arg7[%c0_21, %c0_22] : memref<64x1xf32, #tpu.memory_space<vmem>>, vector<64x1xf32>
    %76 = arith.truncf %73 : vector<32x256xf32> to vector<32x256xbf16>
    %cst_23 = arith.constant 0.000000e+00 : bf16
    %77 = vector.broadcast %cst_23 : bf16 to vector<32x128xbf16>
    %78 = tpu.concatenate %76, %77 in 1 : vector<32x256xbf16>, vector<32x128xbf16> -> vector<32x384xbf16>
    %79 = vector.extract_strided_slice %78 {offsets = [0, 0], sizes = [32, 128], strides = [1, 1]} : vector<32x384xbf16> to vector<32x128xbf16>
    %80 = vector.extract_strided_slice %78 {offsets = [0, 1], sizes = [32, 128], strides = [1, 1]} : vector<32x384xbf16> to vector<32x128xbf16>
    %81 = vector.extract_strided_slice %78 {offsets = [0, 2], sizes = [32, 128], strides = [1, 1]} : vector<32x384xbf16> to vector<32x128xbf16>
    %82 = vector.extract_strided_slice %78 {offsets = [0, 16], sizes = [32, 128], strides = [1, 1]} : vector<32x384xbf16> to vector<32x128xbf16>
    %83 = vector.extract_strided_slice %78 {offsets = [0, 17], sizes = [32, 128], strides = [1, 1]} : vector<32x384xbf16> to vector<32x128xbf16>
    %84 = vector.extract_strided_slice %78 {offsets = [0, 18], sizes = [32, 128], strides = [1, 1]} : vector<32x384xbf16> to vector<32x128xbf16>
    %85 = vector.extract_strided_slice %78 {offsets = [0, 32], sizes = [32, 128], strides = [1, 1]} : vector<32x384xbf16> to vector<32x128xbf16>
    %86 = vector.extract_strided_slice %78 {offsets = [0, 33], sizes = [32, 128], strides = [1, 1]} : vector<32x384xbf16> to vector<32x128xbf16>
    %87 = vector.extract_strided_slice %78 {offsets = [0, 34], sizes = [32, 128], strides = [1, 1]} : vector<32x384xbf16> to vector<32x128xbf16>
    %88 = tpu.concatenate %79, %80, %81, %82, %83, %84, %85, %86, %87 in 0 : vector<32x128xbf16>, vector<32x128xbf16>, vector<32x128xbf16>, vector<32x128xbf16>, vector<32x128xbf16>, vector<32x128xbf16>, vector<32x128xbf16>, vector<32x128xbf16>, vector<32x128xbf16> -> vector<288x128xbf16>
    %cst_24 = arith.constant dense<0.000000e+00> : vector<64x128xf32>
    %89 = tpu.matmul %74, %88, %cst_24 {dimension_numbers = #tpu.dot_dimension_numbers<[1], [0], [0], [1], [0, 0, 1, 1], [], []>} : vector<64x288xbf16>, vector<288x128xbf16>, vector<64x128xf32> -> vector<64x128xf32>
    %90 = vector.broadcast %75 : vector<64x1xf32> to vector<64x128xf32>
    %91 = arith.addf %89, %90 : vector<64x128xf32>
    %cst_25 = arith.constant 0.000000e+00 : f32
    %92 = vector.broadcast %cst_25 : f32 to vector<64x128xf32>
    %93 = arith.maximumf %91, %92 : vector<64x128xf32>
    %94 = vector.extract_strided_slice %78 {offsets = [0, 128], sizes = [32, 128], strides = [1, 1]} : vector<32x384xbf16> to vector<32x128xbf16>
    %95 = vector.extract_strided_slice %78 {offsets = [0, 129], sizes = [32, 128], strides = [1, 1]} : vector<32x384xbf16> to vector<32x128xbf16>
    %96 = vector.extract_strided_slice %78 {offsets = [0, 130], sizes = [32, 128], strides = [1, 1]} : vector<32x384xbf16> to vector<32x128xbf16>
    %97 = vector.extract_strided_slice %78 {offsets = [0, 144], sizes = [32, 128], strides = [1, 1]} : vector<32x384xbf16> to vector<32x128xbf16>
    %98 = vector.extract_strided_slice %78 {offsets = [0, 145], sizes = [32, 128], strides = [1, 1]} : vector<32x384xbf16> to vector<32x128xbf16>
    %99 = vector.extract_strided_slice %78 {offsets = [0, 146], sizes = [32, 128], strides = [1, 1]} : vector<32x384xbf16> to vector<32x128xbf16>
    %100 = vector.extract_strided_slice %78 {offsets = [0, 160], sizes = [32, 128], strides = [1, 1]} : vector<32x384xbf16> to vector<32x128xbf16>
    %101 = vector.extract_strided_slice %78 {offsets = [0, 161], sizes = [32, 128], strides = [1, 1]} : vector<32x384xbf16> to vector<32x128xbf16>
    %102 = vector.extract_strided_slice %78 {offsets = [0, 162], sizes = [32, 128], strides = [1, 1]} : vector<32x384xbf16> to vector<32x128xbf16>
    %103 = tpu.concatenate %94, %95, %96, %97, %98, %99, %100, %101, %102 in 0 : vector<32x128xbf16>, vector<32x128xbf16>, vector<32x128xbf16>, vector<32x128xbf16>, vector<32x128xbf16>, vector<32x128xbf16>, vector<32x128xbf16>, vector<32x128xbf16>, vector<32x128xbf16> -> vector<288x128xbf16>
    %cst_26 = arith.constant dense<0.000000e+00> : vector<64x128xf32>
    %104 = tpu.matmul %74, %103, %cst_26 {dimension_numbers = #tpu.dot_dimension_numbers<[1], [0], [0], [1], [0, 0, 1, 1], [], []>} : vector<64x288xbf16>, vector<288x128xbf16>, vector<64x128xf32> -> vector<64x128xf32>
    %105 = vector.broadcast %75 : vector<64x1xf32> to vector<64x128xf32>
    %106 = arith.addf %104, %105 : vector<64x128xf32>
    %cst_27 = arith.constant 0.000000e+00 : f32
    %107 = vector.broadcast %cst_27 : f32 to vector<64x128xf32>
    %108 = arith.maximumf %106, %107 : vector<64x128xf32>
    %109 = tpu.concatenate %93, %108 in 1 : vector<64x128xf32>, vector<64x128xf32> -> vector<64x256xf32>
    %c0_28 = arith.constant 0 : index
    %c0_29 = arith.constant 0 : index
    %110 = vector.load %arg8[%c0_28, %c0_29] : memref<16x576xbf16, #tpu.memory_space<vmem>>, vector<16x576xbf16>
    %c0_30 = arith.constant 0 : index
    %c0_31 = arith.constant 0 : index
    %111 = vector.load %arg9[%c0_30, %c0_31] : memref<16x1xf32, #tpu.memory_space<vmem>>, vector<16x1xf32>
    %112 = arith.truncf %109 : vector<64x256xf32> to vector<64x256xbf16>
    %cst_32 = arith.constant 0.000000e+00 : bf16
    %113 = vector.broadcast %cst_32 : bf16 to vector<64x128xbf16>
    %114 = tpu.concatenate %112, %113 in 1 : vector<64x256xbf16>, vector<64x128xbf16> -> vector<64x384xbf16>
    %115 = vector.extract_strided_slice %114 {offsets = [0, 0], sizes = [64, 128], strides = [1, 1]} : vector<64x384xbf16> to vector<64x128xbf16>
    %116 = vector.extract_strided_slice %114 {offsets = [0, 1], sizes = [64, 128], strides = [1, 1]} : vector<64x384xbf16> to vector<64x128xbf16>
    %117 = vector.extract_strided_slice %114 {offsets = [0, 2], sizes = [64, 128], strides = [1, 1]} : vector<64x384xbf16> to vector<64x128xbf16>
    %118 = vector.extract_strided_slice %114 {offsets = [0, 16], sizes = [64, 128], strides = [1, 1]} : vector<64x384xbf16> to vector<64x128xbf16>
    %119 = vector.extract_strided_slice %114 {offsets = [0, 17], sizes = [64, 128], strides = [1, 1]} : vector<64x384xbf16> to vector<64x128xbf16>
    %120 = vector.extract_strided_slice %114 {offsets = [0, 18], sizes = [64, 128], strides = [1, 1]} : vector<64x384xbf16> to vector<64x128xbf16>
    %121 = vector.extract_strided_slice %114 {offsets = [0, 32], sizes = [64, 128], strides = [1, 1]} : vector<64x384xbf16> to vector<64x128xbf16>
    %122 = vector.extract_strided_slice %114 {offsets = [0, 33], sizes = [64, 128], strides = [1, 1]} : vector<64x384xbf16> to vector<64x128xbf16>
    %123 = vector.extract_strided_slice %114 {offsets = [0, 34], sizes = [64, 128], strides = [1, 1]} : vector<64x384xbf16> to vector<64x128xbf16>
    %124 = tpu.concatenate %115, %116, %117, %118, %119, %120, %121, %122, %123 in 0 : vector<64x128xbf16>, vector<64x128xbf16>, vector<64x128xbf16>, vector<64x128xbf16>, vector<64x128xbf16>, vector<64x128xbf16>, vector<64x128xbf16>, vector<64x128xbf16>, vector<64x128xbf16> -> vector<576x128xbf16>
    %cst_33 = arith.constant dense<0.000000e+00> : vector<16x128xf32>
    %125 = tpu.matmul %110, %124, %cst_33 {dimension_numbers = #tpu.dot_dimension_numbers<[1], [0], [0], [1], [0, 0, 1, 1], [], []>} : vector<16x576xbf16>, vector<576x128xbf16>, vector<16x128xf32> -> vector<16x128xf32>
    %126 = vector.broadcast %111 : vector<16x1xf32> to vector<16x128xf32>
    %127 = arith.addf %125, %126 : vector<16x128xf32>
    %128 = vector.extract_strided_slice %114 {offsets = [0, 128], sizes = [64, 128], strides = [1, 1]} : vector<64x384xbf16> to vector<64x128xbf16>
    %129 = vector.extract_strided_slice %114 {offsets = [0, 129], sizes = [64, 128], strides = [1, 1]} : vector<64x384xbf16> to vector<64x128xbf16>
    %130 = vector.extract_strided_slice %114 {offsets = [0, 130], sizes = [64, 128], strides = [1, 1]} : vector<64x384xbf16> to vector<64x128xbf16>
    %131 = vector.extract_strided_slice %114 {offsets = [0, 144], sizes = [64, 128], strides = [1, 1]} : vector<64x384xbf16> to vector<64x128xbf16>
    %132 = vector.extract_strided_slice %114 {offsets = [0, 145], sizes = [64, 128], strides = [1, 1]} : vector<64x384xbf16> to vector<64x128xbf16>
    %133 = vector.extract_strided_slice %114 {offsets = [0, 146], sizes = [64, 128], strides = [1, 1]} : vector<64x384xbf16> to vector<64x128xbf16>
    %134 = vector.extract_strided_slice %114 {offsets = [0, 160], sizes = [64, 128], strides = [1, 1]} : vector<64x384xbf16> to vector<64x128xbf16>
    %135 = vector.extract_strided_slice %114 {offsets = [0, 161], sizes = [64, 128], strides = [1, 1]} : vector<64x384xbf16> to vector<64x128xbf16>
    %136 = vector.extract_strided_slice %114 {offsets = [0, 162], sizes = [64, 128], strides = [1, 1]} : vector<64x384xbf16> to vector<64x128xbf16>
    %137 = tpu.concatenate %128, %129, %130, %131, %132, %133, %134, %135, %136 in 0 : vector<64x128xbf16>, vector<64x128xbf16>, vector<64x128xbf16>, vector<64x128xbf16>, vector<64x128xbf16>, vector<64x128xbf16>, vector<64x128xbf16>, vector<64x128xbf16>, vector<64x128xbf16> -> vector<576x128xbf16>
    %cst_34 = arith.constant dense<0.000000e+00> : vector<16x128xf32>
    %138 = tpu.matmul %110, %137, %cst_34 {dimension_numbers = #tpu.dot_dimension_numbers<[1], [0], [0], [1], [0, 0, 1, 1], [], []>} : vector<16x576xbf16>, vector<576x128xbf16>, vector<16x128xf32> -> vector<16x128xf32>
    %139 = vector.broadcast %111 : vector<16x1xf32> to vector<16x128xf32>
    %140 = arith.addf %138, %139 : vector<16x128xf32>
    %141 = tpu.concatenate %127, %140 in 1 : vector<16x128xf32>, vector<16x128xf32> -> vector<16x256xf32>
    %142 = vector.extract_strided_slice %141 {offsets = [0, 0], sizes = [9, 8], strides = [1, 1]} : vector<16x256xf32> to vector<9x8xf32>
    %c0_35 = arith.constant 0 : index
    %c0_36 = arith.constant 0 : index
    %c0_37 = arith.constant 0 : index
    %143 = vector.load %arg10[%c0_35, %c0_36, %c0_37] : memref<1x9x64xf32, #tpu.memory_space<vmem>>, vector<1x9x8xf32>
    %144 = vector.shape_cast %143 : vector<1x9x8xf32> to vector<9x8xf32>
    %145 = vector.shape_cast %142 : vector<9x8xf32> to vector<1x9x8xf32>
    tpu.vector_store %arg10[%c0_35, %c0_36, %c0_37], %145 {strides = array<i32>} : memref<1x9x64xf32, #tpu.memory_space<vmem>>, vector<1x9x8xf32>,
    %146 = vector.extract_strided_slice %141 {offsets = [0, 16], sizes = [9, 8], strides = [1, 1]} : vector<16x256xf32> to vector<9x8xf32>
    %c0_38 = arith.constant 0 : index
    %c0_39 = arith.constant 0 : index
    %c8 = arith.constant 8 : index
    %147 = vector.load %arg10[%c0_38, %c0_39, %c8] : memref<1x9x64xf32, #tpu.memory_space<vmem>>, vector<1x9x8xf32>
    %148 = vector.shape_cast %147 : vector<1x9x8xf32> to vector<9x8xf32>
    %149 = vector.shape_cast %146 : vector<9x8xf32> to vector<1x9x8xf32>
    tpu.vector_store %arg10[%c0_38, %c0_39, %c8], %149 {strides = array<i32>} : memref<1x9x64xf32, #tpu.memory_space<vmem>>, vector<1x9x8xf32>,
    %150 = vector.extract_strided_slice %141 {offsets = [0, 32], sizes = [9, 8], strides = [1, 1]} : vector<16x256xf32> to vector<9x8xf32>
    %c0_40 = arith.constant 0 : index
    %c0_41 = arith.constant 0 : index
    %c16 = arith.constant 16 : index
    %151 = vector.load %arg10[%c0_40, %c0_41, %c16] : memref<1x9x64xf32, #tpu.memory_space<vmem>>, vector<1x9x8xf32>
    %152 = vector.shape_cast %151 : vector<1x9x8xf32> to vector<9x8xf32>
    %153 = vector.shape_cast %150 : vector<9x8xf32> to vector<1x9x8xf32>
    tpu.vector_store %arg10[%c0_40, %c0_41, %c16], %153 {strides = array<i32>} : memref<1x9x64xf32, #tpu.memory_space<vmem>>, vector<1x9x8xf32>,
    %154 = vector.extract_strided_slice %141 {offsets = [0, 48], sizes = [9, 8], strides = [1, 1]} : vector<16x256xf32> to vector<9x8xf32>
    %c0_42 = arith.constant 0 : index
    %c0_43 = arith.constant 0 : index
    %c24 = arith.constant 24 : index
    %155 = vector.load %arg10[%c0_42, %c0_43, %c24] : memref<1x9x64xf32, #tpu.memory_space<vmem>>, vector<1x9x8xf32>
    %156 = vector.shape_cast %155 : vector<1x9x8xf32> to vector<9x8xf32>
    %157 = vector.shape_cast %154 : vector<9x8xf32> to vector<1x9x8xf32>
    tpu.vector_store %arg10[%c0_42, %c0_43, %c24], %157 {strides = array<i32>} : memref<1x9x64xf32, #tpu.memory_space<vmem>>, vector<1x9x8xf32>,
    %158 = vector.extract_strided_slice %141 {offsets = [0, 64], sizes = [9, 8], strides = [1, 1]} : vector<16x256xf32> to vector<9x8xf32>
    %c0_44 = arith.constant 0 : index
    %c0_45 = arith.constant 0 : index
    %c32 = arith.constant 32 : index
    %159 = vector.load %arg10[%c0_44, %c0_45, %c32] : memref<1x9x64xf32, #tpu.memory_space<vmem>>, vector<1x9x8xf32>
    %160 = vector.shape_cast %159 : vector<1x9x8xf32> to vector<9x8xf32>
    %161 = vector.shape_cast %158 : vector<9x8xf32> to vector<1x9x8xf32>
    tpu.vector_store %arg10[%c0_44, %c0_45, %c32], %161 {strides = array<i32>} : memref<1x9x64xf32, #tpu.memory_space<vmem>>, vector<1x9x8xf32>,
    %162 = vector.extract_strided_slice %141 {offsets = [0, 80], sizes = [9, 8], strides = [1, 1]} : vector<16x256xf32> to vector<9x8xf32>
    %c0_46 = arith.constant 0 : index
    %c0_47 = arith.constant 0 : index
    %c40 = arith.constant 40 : index
    %163 = vector.load %arg10[%c0_46, %c0_47, %c40] : memref<1x9x64xf32, #tpu.memory_space<vmem>>, vector<1x9x8xf32>
    %164 = vector.shape_cast %163 : vector<1x9x8xf32> to vector<9x8xf32>
    %165 = vector.shape_cast %162 : vector<9x8xf32> to vector<1x9x8xf32>
    tpu.vector_store %arg10[%c0_46, %c0_47, %c40], %165 {strides = array<i32>} : memref<1x9x64xf32, #tpu.memory_space<vmem>>, vector<1x9x8xf32>,
    %166 = vector.extract_strided_slice %141 {offsets = [0, 96], sizes = [9, 8], strides = [1, 1]} : vector<16x256xf32> to vector<9x8xf32>
    %c0_48 = arith.constant 0 : index
    %c0_49 = arith.constant 0 : index
    %c48 = arith.constant 48 : index
    %167 = vector.load %arg10[%c0_48, %c0_49, %c48] : memref<1x9x64xf32, #tpu.memory_space<vmem>>, vector<1x9x8xf32>
    %168 = vector.shape_cast %167 : vector<1x9x8xf32> to vector<9x8xf32>
    %169 = vector.shape_cast %166 : vector<9x8xf32> to vector<1x9x8xf32>
    tpu.vector_store %arg10[%c0_48, %c0_49, %c48], %169 {strides = array<i32>} : memref<1x9x64xf32, #tpu.memory_space<vmem>>, vector<1x9x8xf32>,
    %170 = vector.extract_strided_slice %141 {offsets = [0, 112], sizes = [9, 8], strides = [1, 1]} : vector<16x256xf32> to vector<9x8xf32>
    %c0_50 = arith.constant 0 : index
    %c0_51 = arith.constant 0 : index
    %c56 = arith.constant 56 : index
    %171 = vector.load %arg10[%c0_50, %c0_51, %c56] : memref<1x9x64xf32, #tpu.memory_space<vmem>>, vector<1x9x8xf32>
    %172 = vector.shape_cast %171 : vector<1x9x8xf32> to vector<9x8xf32>
    %173 = vector.shape_cast %170 : vector<9x8xf32> to vector<1x9x8xf32>
    tpu.vector_store %arg10[%c0_50, %c0_51, %c56], %173 {strides = array<i32>} : memref<1x9x64xf32, #tpu.memory_space<vmem>>, vector<1x9x8xf32>,
    return
  }
  func.func @transform_0(%arg0: i32) -> (i32, i32, i32) {
    %c0_i32 = arith.constant 0 : i32
    %c0_i32_0 = arith.constant 0 : i32
    %c0_i32_1 = arith.constant 0 : i32
    return %arg0, %c0_i32, %c0_i32_0 : i32, i32, i32
  }
  func.func @transform_1(%arg0: i32) -> (i32, i32) {
    %c0_i32 = arith.constant 0 : i32
    %c0_i32_0 = arith.constant 0 : i32
    %c0_i32_1 = arith.constant 0 : i32
    return %c0_i32, %c0_i32_0 : i32, i32
  }
  func.func @transform_2(%arg0: i32) -> (i32, i32) {
    %c0_i32 = arith.constant 0 : i32
    %c0_i32_0 = arith.constant 0 : i32
    %c0_i32_1 = arith.constant 0 : i32
    return %c0_i32, %c0_i32_0 : i32, i32
  }
  func.func @transform_3(%arg0: i32) -> (i32, i32) {
    %c0_i32 = arith.constant 0 : i32
    %c0_i32_0 = arith.constant 0 : i32
    %c0_i32_1 = arith.constant 0 : i32
    return %c0_i32, %c0_i32_0 : i32, i32
  }
  func.func @transform_4(%arg0: i32) -> (i32, i32) {
    %c0_i32 = arith.constant 0 : i32
    %c0_i32_0 = arith.constant 0 : i32
    %c0_i32_1 = arith.constant 0 : i32
    return %c0_i32, %c0_i32_0 : i32, i32
  }
  func.func @transform_5(%arg0: i32) -> (i32, i32) {
    %c0_i32 = arith.constant 0 : i32
    %c0_i32_0 = arith.constant 0 : i32
    %c0_i32_1 = arith.constant 0 : i32
    return %c0_i32, %c0_i32_0 : i32, i32
  }
  func.func @transform_6(%arg0: i32) -> (i32, i32) {
    %c0_i32 = arith.constant 0 : i32
    %c0_i32_0 = arith.constant 0 : i32
    %c0_i32_1 = arith.constant 0 : i32
    return %c0_i32, %c0_i32_0 : i32, i32
  }
  func.func @transform_7(%arg0: i32) -> (i32, i32) {
    %c0_i32 = arith.constant 0 : i32
    %c0_i32_0 = arith.constant 0 : i32
    %c0_i32_1 = arith.constant 0 : i32
    return %c0_i32, %c0_i32_0 : i32, i32
  }
  func.func @transform_8(%arg0: i32) -> (i32, i32) {
    %c0_i32 = arith.constant 0 : i32
    %c0_i32_0 = arith.constant 0 : i32
    %c0_i32_1 = arith.constant 0 : i32
    return %c0_i32, %c0_i32_0 : i32, i32
  }
  func.func @transform_9(%arg0: i32) -> (i32, i32, i32) {
    %c0_i32 = arith.constant 0 : i32
    %c0_i32_0 = arith.constant 0 : i32
    %c0_i32_1 = arith.constant 0 : i32
    return %arg0, %c0_i32, %c0_i32_0 : i32, i32, i32
  }
}

</mosaic_0001>

<llo_original>
// kernel: model_forward.1
$region0: #{model_forward.1}
  #allocation0 [shape = 'u32[]', space=smem, size = 0x4, offset = 0x4, fixed_abs, tag = 'smem constant byte address 0x4 - core index']
  #allocation1 [shape = 'u32[72,128]{1,0:T(1,128)}', space=vmem, size = 0x9000, scoped, tag = 'internal scratch']
  %s0 = inlined_call_operand.vmem [shape: f32[2,8,256], index: 0, kind: input, shape index: {}]
  %s1 = inlined_call_operand.vmem [shape: bf16[16,72], index: 1, kind: input, shape index: {}]
  %s2 = inlined_call_operand.vmem [shape: f32[16,1], index: 2, kind: input, shape index: {}]
  %s3 = inlined_call_operand.vmem [shape: bf16[32,144], index: 3, kind: input, shape index: {}]
  %s4 = inlined_call_operand.vmem [shape: f32[32,1], index: 4, kind: input, shape index: {}]
  %s5 = inlined_call_operand.vmem [shape: bf16[64,288], index: 5, kind: input, shape index: {}]
  %s6 = inlined_call_operand.vmem [shape: f32[64,1], index: 6, kind: input, shape index: {}]
  %s7 = inlined_call_operand.vmem [shape: bf16[16,576], index: 7, kind: input, shape index: {}]
  %s8 = inlined_call_operand.vmem [shape: f32[16,1], index: 8, kind: input, shape index: {}]
  %s9 = inlined_call_operand.vmem [shape: f32[2,9,64], index: 9, kind: output, shape index: {}]
  %s10 = sld [smem:[#allocation0]]
  $region69: #{model_forward.1} parent=0
    _
  %s12 = ssub.s32 1, %s10
  %s13 = scalar_select 0, %s12, %s10
  loop: start=0, step=1, limit=4
  $region2: #{model_forward.1} parent=0 // loop_pre_header
    _
  $region3: #{model_forward.1} parent=0 // loop_header
    %s15 = sphi 0, %s19
    %p16 = scmp.ge.s32.totalorder %s15, 4
    %s25 = sphi 0, %s27
    %s28 = sphi 0, %s25
    %s29 = sphi 0, %s28
    %s45 = sphi 0, %s29
    %s49 = sphi 0, %s49
    %s51 = sphi 0, %s49
    %s52 = sphi 0, %s51
    %s66 = sphi 0, %s52
    %s70 = sphi 0, %s70
    %s72 = sphi 0, %s70
    %s73 = sphi 0, %s72
    %s87 = sphi 0, %s73
    %s91 = sphi 0, %s91
    %s93 = sphi 0, %s91
    %s94 = sphi 0, %s93
    %s108 = sphi 0, %s94
    %s112 = sphi 0, %s112
    %s114 = sphi 0, %s112
    %s115 = sphi 0, %s114
    %s129 = sphi 0, %s115
    %s133 = sphi 0, %s133
    %s135 = sphi 0, %s133
    %s136 = sphi 0, %s135
    %s150 = sphi 0, %s136
    %s154 = sphi 0, %s154
    %s156 = sphi 0, %s154
    %s157 = sphi 0, %s156
    %s171 = sphi 0, %s157
    %s175 = sphi 0, %s175
    %s177 = sphi 0, %s175
    %s178 = sphi 0, %s177
    %s192 = sphi 0, %s178
    %s196 = sphi 0, %s196
    %s198 = sphi 0, %s196
    %s199 = sphi 0, %s198
    %s213 = sphi 0, %s199
    %s219 = sphi 0, %s221
    %s222 = sphi 0, %s219
    %s223 = sphi 0, %s222
    %s239 = sphi 0, %s223
  $region4: #{model_forward.1} parent=0 // loop_header_branch
    %18 = sbr.rel (%p16) target = $region8
  $region5: #{model_forward.1} parent=0 // loop_body
    %s20 = ssub.s32 %s15, 1
    %s21 = ssub.s32 %s15, 2
    %s22 = sadd.s32 %s15, 1
    %s23 = ssub.s32 %s15, %s22
    %p24 = scmp.eq.s32.totalorder %s23, 0
    %s26 = sadd.s32 %s25, 1
    %s27 = scalar_select %p24, %s25, %s26
    %p30 = pneg %p24
    %p31 = scmp.eq.s32.totalorder %s15, 1
    %p32 = por %p30, %p31
    %p33 = scmp.ne.s32.totalorder %s25, %s28
    %p34 = scmp.eq.s32.totalorder %s15, 0
    %p35 = por %p33, %p34
    %p36 = scmp.ne.s32.totalorder %s25, %s28
    %p37 = scmp.eq.s32.totalorder %s20, 1
    %p38 = por %p36, %p37
    %p39 = scmp.ne.s32.totalorder %s28, %s29
    %p40 = scmp.eq.s32.totalorder %s20, 0
    %p41 = por %p39, %p40
    %p42 = scmp.ne.s32.totalorder %s28, %s29
    %p43 = scmp.eq.s32.totalorder %s21, 1
    %p44 = por %p42, %p43
    %p46 = scmp.ne.s32.totalorder %s29, %s45
    %p47 = scmp.eq.s32.totalorder %s21, 0
    %p48 = por %p46, %p47
    %s50 = sadd.s32 %s49, 1
    %p53 = scmp.eq.s32.totalorder %s15, 1
    %p54 = scmp.ne.s32.totalorder %s49, %s51
    %p55 = scmp.eq.s32.totalorder %s15, 0
    %p56 = por %p54, %p55
    %p57 = scmp.ne.s32.totalorder %s49, %s51
    %p58 = scmp.eq.s32.totalorder %s20, 1
    %p59 = por %p57, %p58
    %p60 = scmp.ne.s32.totalorder %s51, %s52
    %p61 = scmp.eq.s32.totalorder %s20, 0
    %p62 = por %p60, %p61
    %p63 = scmp.ne.s32.totalorder %s51, %s52
    %p64 = scmp.eq.s32.totalorder %s21, 1
    %p65 = por %p63, %p64
    %p67 = scmp.ne.s32.totalorder %s52, %s66
    %p68 = scmp.eq.s32.totalorder %s21, 0
    %p69 = por %p67, %p68
    %s71 = sadd.s32 %s70, 1
    %p74 = scmp.eq.s32.totalorder %s15, 1
    %p75 = scmp.ne.s32.totalorder %s70, %s72
    %p76 = scmp.eq.s32.totalorder %s15, 0
    %p77 = por %p75, %p76
    %p78 = scmp.ne.s32.totalorder %s70, %s72
    %p79 = scmp.eq.s32.totalorder %s20, 1
    %p80 = por %p78, %p79
    %p81 = scmp.ne.s32.totalorder %s72, %s73
    %p82 = scmp.eq.s32.totalorder %s20, 0
    %p83 = por %p81, %p82
    %p84 = scmp.ne.s32.totalorder %s72, %s73
    %p85 = scmp.eq.s32.totalorder %s21, 1
    %p86 = por %p84, %p85
    %p88 = scmp.ne.s32.totalorder %s73, %s87
    %p89 = scmp.eq.s32.totalorder %s21, 0
    %p90 = por %p88, %p89
    %s92 = sadd.s32 %s91, 1
    %p95 = scmp.eq.s32.totalorder %s15, 1
    %p96 = scmp.ne.s32.totalorder %s91, %s93
    %p97 = scmp.eq.s32.totalorder %s15, 0
    %p98 = por %p96, %p97
    %p99 = scmp.ne.s32.totalorder %s91, %s93
    %p100 = scmp.eq.s32.totalorder %s20, 1
    %p101 = por %p99, %p100
    %p102 = scmp.ne.s32.totalorder %s93, %s94
    %p103 = scmp.eq.s32.totalorder %s20, 0
    %p104 = por %p102, %p103
    %p105 = scmp.ne.s32.totalorder %s93, %s94
    %p106 = scmp.eq.s32.totalorder %s21, 1
    %p107 = por %p105, %p106
    %p109 = scmp.ne.s32.totalorder %s94, %s108
    %p110 = scmp.eq.s32.totalorder %s21, 0
    %p111 = por %p109, %p110
    %s113 = sadd.s32 %s112, 1
    %p116 = scmp.eq.s32.totalorder %s15, 1
    %p117 = scmp.ne.s32.totalorder %s112, %s114
    %p118 = scmp.eq.s32.totalorder %s15, 0
    %p119 = por %p117, %p118
    %p120 = scmp.ne.s32.totalorder %s112, %s114
    %p121 = scmp.eq.s32.totalorder %s20, 1
    %p122 = por %p120, %p121
    %p123 = scmp.ne.s32.totalorder %s114, %s115
    %p124 = scmp.eq.s32.totalorder %s20, 0
    %p125 = por %p123, %p124
    %p126 = scmp.ne.s32.totalorder %s114, %s115
    %p127 = scmp.eq.s32.totalorder %s21, 1
    %p128 = por %p126, %p127
    %p130 = scmp.ne.s32.totalorder %s115, %s129
    %p131 = scmp.eq.s32.totalorder %s21, 0
    %p132 = por %p130, %p131
    %s134 = sadd.s32 %s133, 1
    %p137 = scmp.eq.s32.totalorder %s15, 1
    %p138 = scmp.ne.s32.totalorder %s133, %s135
    %p139 = scmp.eq.s32.totalorder %s15, 0
    %p140 = por %p138, %p139
    %p141 = scmp.ne.s32.totalorder %s133, %s135
    %p142 = scmp.eq.s32.totalorder %s20, 1
    %p143 = por %p141, %p142
    %p144 = scmp.ne.s32.totalorder %s135, %s136
    %p145 = scmp.eq.s32.totalorder %s20, 0
    %p146 = por %p144, %p145
    %p147 = scmp.ne.s32.totalorder %s135, %s136
    %p148 = scmp.eq.s32.totalorder %s21, 1
    %p149 = por %p147, %p148
    %p151 = scmp.ne.s32.totalorder %s136, %s150
    %p152 = scmp.eq.s32.totalorder %s21, 0
    %p153 = por %p151, %p152
    %s155 = sadd.s32 %s154, 1
    %p158 = scmp.eq.s32.totalorder %s15, 1
    %p159 = scmp.ne.s32.totalorder %s154, %s156
    %p160 = scmp.eq.s32.totalorder %s15, 0
    %p161 = por %p159, %p160
    %p162 = scmp.ne.s32.totalorder %s154, %s156
    %p163 = scmp.eq.s32.totalorder %s20, 1
    %p164 = por %p162, %p163
    %p165 = scmp.ne.s32.totalorder %s156, %s157
    %p166 = scmp.eq.s32.totalorder %s20, 0
    %p167 = por %p165, %p166
    %p168 = scmp.ne.s32.totalorder %s156, %s157
    %p169 = scmp.eq.s32.totalorder %s21, 1
    %p170 = por %p168, %p169
    %p172 = scmp.ne.s32.totalorder %s157, %s171
    %p173 = scmp.eq.s32.totalorder %s21, 0
    %p174 = por %p172, %p173
    %s176 = sadd.s32 %s175, 1
    %p179 = scmp.eq.s32.totalorder %s15, 1
    %p180 = scmp.ne.s32.totalorder %s175, %s177
    %p181 = scmp.eq.s32.totalorder %s15, 0
    %p182 = por %p180, %p181
    %p183 = scmp.ne.s32.totalorder %s175, %s177
    %p184 = scmp.eq.s32.totalorder %s20, 1
    %p185 = por %p183, %p184
    %p186 = scmp.ne.s32.totalorder %s177, %s178
    %p187 = scmp.eq.s32.totalorder %s20, 0
    %p188 = por %p186, %p187
    %p189 = scmp.ne.s32.totalorder %s177, %s178
    %p190 = scmp.eq.s32.totalorder %s21, 1
    %p191 = por %p189, %p190
    %p193 = scmp.ne.s32.totalorder %s178, %s192
    %p194 = scmp.eq.s32.totalorder %s21, 0
    %p195 = por %p193, %p194
    %s197 = sadd.s32 %s196, 1
    %p200 = scmp.eq.s32.totalorder %s15, 1
    %p201 = scmp.ne.s32.totalorder %s196, %s198
    %p202 = scmp.eq.s32.totalorder %s15, 0
    %p203 = por %p201, %p202
    %p204 = scmp.ne.s32.totalorder %s196, %s198
    %p205 = scmp.eq.s32.totalorder %s20, 1
    %p206 = por %p204, %p205
    %p207 = scmp.ne.s32.totalorder %s198, %s199
    %p208 = scmp.eq.s32.totalorder %s20, 0
    %p209 = por %p207, %p208
    %p210 = scmp.ne.s32.totalorder %s198, %s199
    %p211 = scmp.eq.s32.totalorder %s21, 1
    %p212 = por %p210, %p211
    %p214 = scmp.ne.s32.totalorder %s199, %s213
    %p215 = scmp.eq.s32.totalorder %s21, 0
    %p216 = por %p214, %p215
    %s217 = ssub.s32 %s15, %s22
    %p218 = scmp.eq.s32.totalorder %s217, 0
    %s220 = sadd.s32 %s219, 1
    %s221 = scalar_select %p218, %s219, %s220
    %p224 = pneg %p218
    %p225 = scmp.eq.s32.totalorder %s15, 1
    %p226 = por %p224, %p225
    %p227 = scmp.ne.s32.totalorder %s219, %s222
    %p228 = scmp.eq.s32.totalorder %s15, 0
    %p229 = por %p227, %p228
    %p230 = scmp.ne.s32.totalorder %s219, %s222
    %p231 = scmp.eq.s32.totalorder %s20, 1
    %p232 = por %p230, %p231
    %p233 = scmp.ne.s32.totalorder %s222, %s223
    %p234 = scmp.eq.s32.totalorder %s20, 0
    %p235 = por %p233, %p234
    %p236 = scmp.ne.s32.totalorder %s222, %s223
    %p237 = scmp.eq.s32.totalorder %s21, 1
    %p238 = por %p236, %p237
    %p240 = scmp.ne.s32.totalorder %s223, %s239
    %p241 = scmp.eq.s32.totalorder %s21, 0
    %p242 = por %p240, %p241
    %p243 = scmp.le.s32.totalorder 1, %s15
    %p244 = scmp.lt.s32.totalorder %s15, 3
    %p245 = pnand %p243, %p244
    %p246 = pneg %p245
    // Predicated region
    $region9: #{model_forward.1} parent=5 // pred_check
      _
    $region10: #{model_forward.1} parent=5 // pred_check_branch
      %248 = sbr.rel (%p245) target = $region12
    $region11: #{model_forward.1} parent=5 // pred_region
      %s249 = ssub.s32 %s15, 1
      // Predicated region
      $region13: #{model_forward.1} parent=11 // pred_check
        %p250 = pneg %p62
      $region14: #{model_forward.1} parent=11 // pred_check_branch
        %252 = sbr.rel (%p250) target = $region16
      $region15: #{model_forward.1} parent=11 // pred_region
        _
      $region16: #{model_forward.1} parent=11 // pred_fallthru
        _
      // Predicated region
      $region17: #{model_forward.1} parent=11 // pred_check
        %p253 = pneg %p83
      $region18: #{model_forward.1} parent=11 // pred_check_branch
        %255 = sbr.rel (%p253) target = $region20
      $region19: #{model_forward.1} parent=11 // pred_region
        _
      $region20: #{model_forward.1} parent=11 // pred_fallthru
        _
      // Predicated region
      $region21: #{model_forward.1} parent=11 // pred_check
        %p256 = pneg %p104
      $region22: #{model_forward.1} parent=11 // pred_check_branch
        %258 = sbr.rel (%p256) target = $region24
      $region23: #{model_forward.1} parent=11 // pred_region
        _
      $region24: #{model_forward.1} parent=11 // pred_fallthru
        _
      // Predicated region
      $region25: #{model_forward.1} parent=11 // pred_check
        %p259 = pneg %p125
      $region26: #{model_forward.1} parent=11 // pred_check_branch
        %261 = sbr.rel (%p259) target = $region28
      $region27: #{model_forward.1} parent=11 // pred_region
        _
      $region28: #{model_forward.1} parent=11 // pred_fallthru
        _
      // Predicated region
      $region29: #{model_forward.1} parent=11 // pred_check
        %p262 = pneg %p146
      $region30: #{model_forward.1} parent=11 // pred_check_branch
        %264 = sbr.rel (%p262) target = $region32
      $region31: #{model_forward.1} parent=11 // pred_region
        _
      $region32: #{model_forward.1} parent=11 // pred_fallthru
        _
      // Predicated region
      $region33: #{model_forward.1} parent=11 // pred_check
        %p265 = pneg %p167
      $region34: #{model_forward.1} parent=11 // pred_check_branch
        %267 = sbr.rel (%p265) target = $region36
      $region35: #{model_forward.1} parent=11 // pred_region
        _
      $region36: #{model_forward.1} parent=11 // pred_fallthru
        _
      // Predicated region
      $region37: #{model_forward.1} parent=11 // pred_check
        %p268 = pneg %p188
      $region38: #{model_forward.1} parent=11 // pred_check_branch
        %270 = sbr.rel (%p268) target = $region40
      $region39: #{model_forward.1} parent=11 // pred_region
        _
      $region40: #{model_forward.1} parent=11 // pred_fallthru
        _
      // Predicated region
      $region41: #{model_forward.1} parent=11 // pred_check
        %p271 = pneg %p209
      $region42: #{model_forward.1} parent=11 // pred_check_branch
        %273 = sbr.rel (%p271) target = $region44
      $region43: #{model_forward.1} parent=11 // pred_region
        _
      $region44: #{model_forward.1} parent=11 // pred_fallthru
        _
    $region12: #{model_forward.1} parent=5 // pred_fallthru
      _
    %p274 = scmp.lt.s32.totalorder %s15, 2
    // Predicated region
    $region45: #{model_forward.1} parent=5 // pred_check
      %p275 = pneg %p274
    $region46: #{model_forward.1} parent=5 // pred_check_branch
      %277 = sbr.rel (%p275) target = $region48
    $region47: #{model_forward.1} parent=5 // pred_region
      // Predicated region
      $region49: #{model_forward.1} parent=47 // pred_check
        %p278 = pneg %p35
      $region50: #{model_forward.1} parent=47 // pred_check_branch
        %280 = sbr.rel (%p278) target = $region52
      $region51: #{model_forward.1} parent=47 // pred_region
        %p281 = scmp.lt.s32.totalorder %s15, 1
        %s282 = scalar_select %p281, %s15, 1
        %s283 = smul.addr %s282, 2
        %s284 = smul.addr %s283, 8
        %s285 = scalar_lea.vmem %s0, %s284
      $region52: #{model_forward.1} parent=47 // pred_fallthru
        _
    $region48: #{model_forward.1} parent=5 // pred_fallthru
      _
    %p286 = scmp.le.s32.totalorder 1, %s15
    %p287 = scmp.lt.s32.totalorder %s15, 3
    %p288 = pnand %p286, %p287
    %p289 = pneg %p288
    // Predicated region
    $region53: #{model_forward.1} parent=5 // pred_check
      _
    $region54: #{model_forward.1} parent=5 // pred_check_branch
      %291 = sbr.rel (%p288) target = $region56
    $region55: #{model_forward.1} parent=5 // pred_region
      %s292 = ssub.s32 %s15, 1
      %p293 = scmp.lt.s32.totalorder %s20, 1
      %s294 = scalar_select %p293, %s20, 1
      %s295 = smul.addr %s294, 2
      %s296 = smul.addr %s295, 8
      %s297 = scalar_lea.vmem %s0, %s296
      %p298 = pneg %p41
      %p299 = pneg %p38
      %p300 = pneg %p62
      %p301 = pneg %p59
      %p302 = pneg %p83
      %p303 = pneg %p80
      %p304 = pneg %p104
      %p305 = pneg %p101
      %p306 = pneg %p125
      %p307 = pneg %p122
      %p308 = pneg %p146
      %p309 = pneg %p143
      %p310 = pneg %p167
      %p311 = pneg %p164
      %p312 = pneg %p188
      %p313 = pneg %p185
      %p314 = pneg %p209
      %p315 = pneg %p206
      %p316 = pneg %p235
      %p317 = pneg %p232
      %p318 = scmp.lt.s32.totalorder %s20, 1
      %s319 = scalar_select %p318, %s20, 1
      %s320 = smul.addr %s319, 2
      %s321 = smul.addr %s320, 8
      %s322 = scalar_lea.vmem %s9, %s321
      %p323 = scmp.lt.s32.totalorder %s20, 1
      %s324 = scalar_select %p323, %s20, 1
      %s325 = smul.addr %s324, 2
      %s326 = smul.addr %s325, 8
      %s327 = scalar_lea.vmem %s0, %s326
      %p328 = scmp.lt.s32.totalorder %s20, 1
      %s329 = scalar_select %p328, %s20, 1
      %s330 = smul.addr %s329, 2
      %s331 = smul.addr %s330, 8
      %s332 = scalar_lea.vmem %s9, %s331
      %v334 = vld [vmem:[%s327] sm:$0xff]
      %v335 = vld [vmem:[%s327 + $0x8] sm:$0xff]
      %v336 = vld [vmem:[%s1] sm:$0xf]
      %v337 = vld [vmem:[%s1 + $0x4] sm:$0xf]
      %v338 = vld [vmem:[%s2] sm:$0xff]
      %v339 = vld [vmem:[%s2 + $0x8] sm:$0xff]
      %v340 = vpack.c.bf16 %v335, %v334
      %v342 = vunpack.c.l.b16 %v340
      %v343 = vunpack.c.h.b16 %v340
      %v344 = vpack.c.b16 %v342, %v342
      %v345 = vpack.c.b16 %v343, %v343
      %v346 = vrot.slane %v344, 4
      %v347 = vrot.slane %v345, 4
      %348 = vrot.lane.b32.xlu0 %v346, 127
      %v349 = vpop.permute.xlu0 %348
      %350 = vrot.lane.b32.xlu0 %v347, 127
      %v351 = vpop.permute.xlu0 %350
      %vm352 = vcmask 1039360
      %v353 = vsel %vm352, %v349, %v351
      %354 = vrot.lane.b32.xlu0 %v344, 126
      %v355 = vpop.permute.xlu0 %354
      %356 = vrot.lane.b32.xlu0 %v345, 126
      %v357 = vpop.permute.xlu0 %356
      %vm358 = vcmask 1031168
      %v359 = vsel %vm358, %v355, %v357
      %360 = vrot.lane.b32.xlu0 %v346, 112
      %v361 = vpop.permute.xlu0 %360
      %362 = vrot.lane.b32.xlu0 %v347, 112
      %v363 = vpop.permute.xlu0 %362
      %vm364 = vcmask 916480
      %v365 = vsel %vm364, %v361, %v363
      %366 = vrot.lane.b32.xlu0 %v344, 111
      %v367 = vpop.permute.xlu0 %366
      %368 = vrot.lane.b32.xlu0 %v345, 111
      %v369 = vpop.permute.xlu0 %368
      %vm370 = vcmask 908288
      %v371 = vsel %vm370, %v367, %v369
      %372 = vrot.lane.b32.xlu0 %v346, 110
      %v373 = vpop.permute.xlu0 %372
      %374 = vrot.lane.b32.xlu0 %v347, 110
      %v375 = vpop.permute.xlu0 %374
      %vm376 = vcmask 900096
      %v377 = vsel %vm376, %v373, %v375
      %378 = vrot.lane.b32.xlu0 %v344, 96
      %v379 = vpop.permute.xlu0 %378
      %380 = vrot.lane.b32.xlu0 %v345, 96
      %v381 = vpop.permute.xlu0 %380
      %vm382 = vcmask 785408
      %v383 = vsel %vm382, %v379, %v381
      %384 = vrot.lane.b32.xlu0 %v346, 95
      %v385 = vpop.permute.xlu0 %384
      %386 = vrot.lane.b32.xlu0 %v347, 95
      %v387 = vpop.permute.xlu0 %386
      %vm388 = vcmask 777216
      %v389 = vsel %vm388, %v385, %v387
      %390 = vrot.lane.b32.xlu0 %v344, 94
      %v391 = vpop.permute.xlu0 %390
      %392 = vrot.lane.b32.xlu0 %v345, 94
      %v393 = vpop.permute.xlu0 %392
      %vm394 = vcmask 769024
      %v395 = vsel %vm394, %v391, %v393
      %vm396 = vcmask 1043456
      %v399 = vsel %vm396, %v344, %v353
      %v403 = vsel %vm396, %v359, %v365
      %v407 = vsel %vm396, %v371, %v377
      %v411 = vsel %vm396, %v383, %v389
      %414 = vset.pattern.permute.xlu0 0
      %415 = vperm.xlu0 %414, %v338
      %v416 = vpop.permute.xlu0 %415
      %419 = vset.pattern.permute.xlu0 0
      %420 = vperm.xlu0 %419, %v339
      %v421 = vpop.permute.xlu0 %420
      %v425 = vunpack.c.l.b16 %v336
      %v426 = vunpack.c.l.b16 %v337
      %v427 = vpack.c.b16 %v426, %v425
      %vm428 = vcmask 588800
      %v430 = vsel %vm428, %v427, 0
      %v433 = vsel %vm396, %v395, 0
      %435 = vmatpush.bf16.msra.mxu0 0
      %436 = vmatpush.bf16.msra.mxu0 0
      %437 = vmatpush.bf16.msra.mxu0 0
      %438 = vmatpush.bf16.msra.mxu0 %v433
      %439 = vmatpush.bf16.msra.mxu0 %v411
      %440 = vmatpush.bf16.msra.mxu0 %v407
      %441 = vmatpush.bf16.msra.mxu0 %v403
      %442 = vmatpush.bf16.msra.mxu0 %v399
      %443 = vmatmul.bf16.gmra.mxu0 %v430
      %v444 = vpop.f32.mrf.mxu0
      %v445 = vadd.f32 %v416, %v444
      %v446 = vpop.f32.mrf.mxu0
      %v447 = vadd.f32 %v421, %v446
      %448 = vdwg.mxu0
      %v449 = vmax.f32 %v445, 0.0
      %v450 = vmax.f32 %v447, 0.0
      %v452 = vrot.slane 0, 4
      %453 = vrot.lane.b32.xlu0 %v452, 127
      %v454 = vpop.permute.xlu0 %453
      %v455 = vsel %vm352, %v351, %v454
      %456 = vrot.lane.b32.xlu0 0, 126
      %v457 = vpop.permute.xlu0 %456
      %v458 = vsel %vm358, %v357, %v457
      %459 = vrot.lane.b32.xlu0 %v452, 112
      %v460 = vpop.permute.xlu0 %459
      %v461 = vsel %vm364, %v363, %v460
      %462 = vrot.lane.b32.xlu0 0, 111
      %v463 = vpop.permute.xlu0 %462
      %v464 = vsel %vm370, %v369, %v463
      %465 = vrot.lane.b32.xlu0 %v452, 110
      %v466 = vpop.permute.xlu0 %465
      %v467 = vsel %vm376, %v375, %v466
      %468 = vrot.lane.b32.xlu0 0, 96
      %v469 = vpop.permute.xlu0 %468
      %v470 = vsel %vm382, %v381, %v469
      %471 = vrot.lane.b32.xlu0 %v452, 95
      %v472 = vpop.permute.xlu0 %471
      %v473 = vsel %vm388, %v387, %v472
      %474 = vrot.lane.b32.xlu0 0, 94
      %v475 = vpop.permute.xlu0 %474
      %v476 = vsel %vm394, %v393, %v475
      %v479 = vsel %vm396, %v345, %v455
      %v483 = vsel %vm396, %v458, %v461
      %v487 = vsel %vm396, %v464, %v467
      %v491 = vsel %vm396, %v470, %v473
      %v494 = vsel %vm396, %v476, 0
      %496 = vmatpush.bf16.msra.mxu0 0
      %497 = vmatpush.bf16.msra.mxu0 0
      %498 = vmatpush.bf16.msra.mxu0 0
      %499 = vmatpush.bf16.msra.mxu0 %v494
      %500 = vmatpush.bf16.msra.mxu0 %v491
      %501 = vmatpush.bf16.msra.mxu0 %v487
      %502 = vmatpush.bf16.msra.mxu0 %v483
      %503 = vmatpush.bf16.msra.mxu0 %v479
      %504 = vmatmul.bf16.gmra.mxu0 %v430
      %v505 = vpop.f32.mrf.mxu0
      %v506 = vadd.f32 %v416, %v505
      %v507 = vpop.f32.mrf.mxu0
      %v508 = vadd.f32 %v421, %v507
      %509 = vdwg.mxu0
      %v510 = vmax.f32 %v506, 0.0
      %v511 = vmax.f32 %v508, 0.0
      %v512 = vld [vmem:[%s3] sm:$0xff]
      %v513 = vld [vmem:[%s3 + $0x8] sm:$0xff]
      %v514 = vld [vmem:[%s3 + $0x10] sm:$0xff]
      %v515 = vld [vmem:[%s3 + $0x18] sm:$0xff]
      %v516 = vld [vmem:[%s4] sm:$0xff]
      %v517 = vld [vmem:[%s4 + $0x8] sm:$0xff]
      %v518 = vld [vmem:[%s4 + $0x10] sm:$0xff]
      %v519 = vld [vmem:[%s4 + $0x18] sm:$0xff]
      %v520 = vpack.c.bf16 %v510, %v449
      %v521 = vpack.c.bf16 %v511, %v450
      %v524 = vunpack.c.l.b16 %v520
      %v525 = vunpack.c.h.b16 %v520
      %v526 = vunpack.c.l.b16 %v521
      %v527 = vunpack.c.h.b16 %v521
      %v528 = vpack.c.b16 %v526, %v524
      %v529 = vpack.c.b16 %v527, %v525
      %532 = vrot.lane.b32.xlu0 %v528, 127
      %v533 = vpop.permute.xlu0 %532
      %534 = vrot.lane.b32.xlu0 %v529, 127
      %v535 = vpop.permute.xlu0 %534
      %v536 = vsel %vm352, %v533, %v535
      %538 = vrot.lane.b32.xlu0 %v528, 126
      %v539 = vpop.permute.xlu0 %538
      %540 = vrot.lane.b32.xlu0 %v529, 126
      %v541 = vpop.permute.xlu0 %540
      %v542 = vsel %vm358, %v539, %v541
      %544 = vrot.lane.b32.xlu0 %v528, 112
      %v545 = vpop.permute.xlu0 %544
      %546 = vrot.lane.b32.xlu0 %v529, 112
      %v547 = vpop.permute.xlu0 %546
      %v548 = vsel %vm364, %v545, %v547
      %550 = vrot.lane.b32.xlu0 %v528, 111
      %v551 = vpop.permute.xlu0 %550
      %552 = vrot.lane.b32.xlu0 %v529, 111
      %v553 = vpop.permute.xlu0 %552
      %v554 = vsel %vm370, %v551, %v553
      %556 = vrot.lane.b32.xlu0 %v528, 110
      %v557 = vpop.permute.xlu0 %556
      %558 = vrot.lane.b32.xlu0 %v529, 110
      %v559 = vpop.permute.xlu0 %558
      %v560 = vsel %vm376, %v557, %v559
      %562 = vrot.lane.b32.xlu0 %v528, 96
      %v563 = vpop.permute.xlu0 %562
      %564 = vrot.lane.b32.xlu0 %v529, 96
      %v565 = vpop.permute.xlu0 %564
      %v566 = vsel %vm382, %v563, %v565
      %568 = vrot.lane.b32.xlu0 %v528, 95
      %v569 = vpop.permute.xlu0 %568
      %570 = vrot.lane.b32.xlu0 %v529, 95
      %v571 = vpop.permute.xlu0 %570
      %v572 = vsel %vm388, %v569, %v571
      %574 = vrot.lane.b32.xlu0 %v528, 94
      %v575 = vpop.permute.xlu0 %574
      %576 = vrot.lane.b32.xlu0 %v529, 94
      %v577 = vpop.permute.xlu0 %576
      %v578 = vsel %vm394, %v575, %v577
      %581 = vset.pattern.permute.xlu0 0
      %582 = vperm.xlu0 %581, %v516
      %v583 = vpop.permute.xlu0 %582
      %586 = vset.pattern.permute.xlu0 0
      %587 = vperm.xlu0 %586, %v517
      %v588 = vpop.permute.xlu0 %587
      %591 = vset.pattern.permute.xlu0 0
      %592 = vperm.xlu0 %591, %v518
      %v593 = vpop.permute.xlu0 %592
      %596 = vset.pattern.permute.xlu0 0
      %597 = vperm.xlu0 %596, %v519
      %v598 = vpop.permute.xlu0 %597
      %v604 = vunpack.c.l.b16 %v512
      %v605 = vunpack.c.h.b16 %v512
      %v606 = vunpack.c.l.b16 %v513
      %v607 = vunpack.c.h.b16 %v513
      %v608 = vunpack.c.l.b16 %v514
      %v609 = vunpack.c.h.b16 %v514
      %v610 = vunpack.c.l.b16 %v515
      %v611 = vunpack.c.h.b16 %v515
      %v612 = vpack.c.b16 %v606, %v604
      %v613 = vpack.c.b16 %v607, %v605
      %v614 = vpack.c.b16 %v610, %v608
      %v615 = vpack.c.b16 %v611, %v609
      %vm618 = vcmask 130048
      %v620 = vsel %vm618, %v613, 0
      %v623 = vsel %vm618, %v615, 0
      %625 = vmatpush.bf16.msra.mxu0 %v572
      %626 = vmatpush.bf16.msra.mxu0 %v566
      %627 = vmatpush.bf16.msra.mxu0 %v560
      %628 = vmatpush.bf16.msra.mxu0 %v554
      %629 = vmatpush.bf16.msra.mxu0 %v548
      %630 = vmatpush.bf16.msra.mxu0 %v542
      %631 = vmatpush.bf16.msra.mxu0 %v536
      %632 = vmatpush.bf16.msra.mxu0 %v528
      %633 = vmatmul.bf16.gmra.mxu0 %v612
      %v634 = vpop.f32.mrf.mxu0
      %v635 = vadd.f32 %v583, %v634
      %v636 = vpop.f32.mrf.mxu0
      %v637 = vadd.f32 %v588, %v636
      %638 = vmatmul.bf16.gmra.mxu0 %v614
      %v639 = vpop.f32.mrf.mxu0
      %v640 = vadd.f32 %v593, %v639
      %v641 = vpop.f32.mrf.mxu0
      %v642 = vadd.f32 %v598, %v641
      %643 = vdwg.mxu0
      %644 = vmatpush.bf16.msra.mxu0 0
      %645 = vmatpush.bf16.msra.mxu0 0
      %646 = vmatpush.bf16.msra.mxu0 0
      %647 = vmatpush.bf16.msra.mxu0 0
      %648 = vmatpush.bf16.msra.mxu0 0
      %649 = vmatpush.bf16.msra.mxu0 0
      %650 = vmatpush.bf16.msra.mxu0 0
      %651 = vmatpush.bf16.msra.mxu0 %v578
      %652 = vmatmul.bf16.gmra.mxu0 %v620
      %v653 = vpop.f32.mrf.mxu0
      %v654 = vadd.f32 %v635, %v653
      %v655 = vpop.f32.mrf.mxu0
      %v656 = vadd.f32 %v637, %v655
      %657 = vmatmul.bf16.gmra.mxu0 %v623
      %v658 = vpop.f32.mrf.mxu0
      %v659 = vadd.f32 %v640, %v658
      %v660 = vpop.f32.mrf.mxu0
      %v661 = vadd.f32 %v642, %v660
      %662 = vdwg.mxu0
      %v663 = vmax.f32 %v654, 0.0
      %v664 = vmax.f32 %v656, 0.0
      %v665 = vmax.f32 %v659, 0.0
      %v666 = vmax.f32 %v661, 0.0
      %667 = vrot.lane.b32.xlu0 0, 127
      %v668 = vpop.permute.xlu0 %667
      %v669 = vsel %vm352, %v535, %v668
      %v671 = vsel %vm358, %v541, %v457
      %673 = vrot.lane.b32.xlu0 0, 112
      %v674 = vpop.permute.xlu0 %673
      %v675 = vsel %vm364, %v547, %v674
      %v677 = vsel %vm370, %v553, %v463
      %679 = vrot.lane.b32.xlu0 0, 110
      %v680 = vpop.permute.xlu0 %679
      %v681 = vsel %vm376, %v559, %v680
      %v683 = vsel %vm382, %v565, %v469
      %685 = vrot.lane.b32.xlu0 0, 95
      %v686 = vpop.permute.xlu0 %685
      %v687 = vsel %vm388, %v571, %v686
      %v689 = vsel %vm394, %v577, %v475
      %691 = vmatpush.bf16.msra.mxu0 %v687
      %692 = vmatpush.bf16.msra.mxu0 %v683
      %693 = vmatpush.bf16.msra.mxu0 %v681
      %694 = vmatpush.bf16.msra.mxu0 %v677
      %695 = vmatpush.bf16.msra.mxu0 %v675
      %696 = vmatpush.bf16.msra.mxu0 %v671
      %697 = vmatpush.bf16.msra.mxu0 %v669
      %698 = vmatpush.bf16.msra.mxu0 %v529
      %699 = vmatmul.bf16.gmra.mxu0 %v612
      %v700 = vpop.f32.mrf.mxu0
      %v701 = vadd.f32 %v583, %v700
      %v702 = vpop.f32.mrf.mxu0
      %v703 = vadd.f32 %v588, %v702
      %704 = vmatmul.bf16.gmra.mxu0 %v614
      %v705 = vpop.f32.mrf.mxu0
      %v706 = vadd.f32 %v593, %v705
      %v707 = vpop.f32.mrf.mxu0
      %v708 = vadd.f32 %v598, %v707
      %709 = vdwg.mxu0
      %710 = vmatpush.bf16.msra.mxu0 0
      %711 = vmatpush.bf16.msra.mxu0 0
      %712 = vmatpush.bf16.msra.mxu0 0
      %713 = vmatpush.bf16.msra.mxu0 0
      %714 = vmatpush.bf16.msra.mxu0 0
      %715 = vmatpush.bf16.msra.mxu0 0
      %716 = vmatpush.bf16.msra.mxu0 0
      %717 = vmatpush.bf16.msra.mxu0 %v689
      %718 = vmatmul.bf16.gmra.mxu0 %v620
      %v719 = vpop.f32.mrf.mxu0
      %v720 = vadd.f32 %v701, %v719
      %v721 = vpop.f32.mrf.mxu0
      %v722 = vadd.f32 %v703, %v721
      %723 = vmatmul.bf16.gmra.mxu0 %v623
      %v724 = vpop.f32.mrf.mxu0
      %v725 = vadd.f32 %v706, %v724
      %v726 = vpop.f32.mrf.mxu0
      %v727 = vadd.f32 %v708, %v726
      %728 = vdwg.mxu0
      %v729 = vmax.f32 %v720, 0.0
      %v730 = vmax.f32 %v722, 0.0
      %v731 = vmax.f32 %v725, 0.0
      %v732 = vmax.f32 %v727, 0.0
      %v733 = vld [vmem:[%s5] sm:$0xff]
      %v734 = vld [vmem:[%s5 + $0x8] sm:$0xf]
      %v735 = vld [vmem:[%s5 + $0xc] sm:$0xff]
      %v736 = vld [vmem:[%s5 + $0x14] sm:$0xf]
      %v737 = vld [vmem:[%s5 + $0x18] sm:$0xff]
      %v738 = vld [vmem:[%s5 + $0x20] sm:$0xf]
      %v739 = vld [vmem:[%s5 + $0x24] sm:$0xff]
      %v740 = vld [vmem:[%s5 + $0x2c] sm:$0xf]
      %v741 = vld [vmem:[%s5 + $0x30] sm:$0xff]
      %v742 = vld [vmem:[%s5 + $0x38] sm:$0xf]
      %v743 = vld [vmem:[%s5 + $0x3c] sm:$0xff]
      %v744 = vld [vmem:[%s5 + $0x44] sm:$0xf]
      %v745 = vld [vmem:[%s5 + $0x48] sm:$0xff]
      %v746 = vld [vmem:[%s5 + $0x50] sm:$0xf]
      %v747 = vld [vmem:[%s5 + $0x54] sm:$0xff]
      %v748 = vld [vmem:[%s5 + $0x5c] sm:$0xf]
      %v749 = vld [vmem:[%s6] sm:$0xff]
      %v750 = vld [vmem:[%s6 + $0x8] sm:$0xff]
      %v751 = vld [vmem:[%s6 + $0x10] sm:$0xff]
      %v752 = vld [vmem:[%s6 + $0x18] sm:$0xff]
      %v753 = vld [vmem:[%s6 + $0x20] sm:$0xff]
      %v754 = vld [vmem:[%s6 + $0x28] sm:$0xff]
      %v755 = vld [vmem:[%s6 + $0x30] sm:$0xff]
      %v756 = vld [vmem:[%s6 + $0x38] sm:$0xff]
      %v757 = vpack.c.bf16 %v729, %v663
      %v758 = vpack.c.bf16 %v730, %v664
      %v759 = vpack.c.bf16 %v731, %v665
      %v760 = vpack.c.bf16 %v732, %v666
      %v765 = vunpack.c.l.b16 %v757
      %v766 = vunpack.c.h.b16 %v757
      %v767 = vunpack.c.l.b16 %v758
      %v768 = vunpack.c.h.b16 %v758
      %v769 = vunpack.c.l.b16 %v759
      %v770 = vunpack.c.h.b16 %v759
      %v771 = vunpack.c.l.b16 %v760
      %v772 = vunpack.c.h.b16 %v760
      %v773 = vpack.c.b16 %v767, %v765
      %v774 = vpack.c.b16 %v768, %v766
      %v775 = vpack.c.b16 %v771, %v769
      %v776 = vpack.c.b16 %v772, %v770
      %781 = vrot.lane.b32.xlu0 %v773, 127
      %v782 = vpop.permute.xlu0 %781
      %783 = vrot.lane.b32.xlu0 %v774, 127
      %v784 = vpop.permute.xlu0 %783
      %785 = vrot.lane.b32.xlu0 %v775, 127
      %v786 = vpop.permute.xlu0 %785
      %787 = vrot.lane.b32.xlu0 %v776, 127
      %v788 = vpop.permute.xlu0 %787
      %v789 = vsel %vm352, %v782, %v784
      %v790 = vsel %vm352, %v786, %v788
      %793 = vrot.lane.b32.xlu0 %v773, 126
      %v794 = vpop.permute.xlu0 %793
      %795 = vrot.lane.b32.xlu0 %v774, 126
      %v796 = vpop.permute.xlu0 %795
      %797 = vrot.lane.b32.xlu0 %v775, 126
      %v798 = vpop.permute.xlu0 %797
      %799 = vrot.lane.b32.xlu0 %v776, 126
      %v800 = vpop.permute.xlu0 %799
      %v801 = vsel %vm358, %v794, %v796
      %v802 = vsel %vm358, %v798, %v800
      %805 = vrot.lane.b32.xlu0 %v773, 112
      %v806 = vpop.permute.xlu0 %805
      %807 = vrot.lane.b32.xlu0 %v774, 112
      %v808 = vpop.permute.xlu0 %807
      %809 = vrot.lane.b32.xlu0 %v775, 112
      %v810 = vpop.permute.xlu0 %809
      %811 = vrot.lane.b32.xlu0 %v776, 112
      %v812 = vpop.permute.xlu0 %811
      %v813 = vsel %vm364, %v806, %v808
      %v814 = vsel %vm364, %v810, %v812
      %817 = vrot.lane.b32.xlu0 %v773, 111
      %v818 = vpop.permute.xlu0 %817
      %819 = vrot.lane.b32.xlu0 %v774, 111
      %v820 = vpop.permute.xlu0 %819
      %821 = vrot.lane.b32.xlu0 %v775, 111
      %v822 = vpop.permute.xlu0 %821
      %823 = vrot.lane.b32.xlu0 %v776, 111
      %v824 = vpop.permute.xlu0 %823
      %v825 = vsel %vm370, %v818, %v820
      %v826 = vsel %vm370, %v822, %v824
      %829 = vrot.lane.b32.xlu0 %v773, 110
      %v830 = vpop.permute.xlu0 %829
      %831 = vrot.lane.b32.xlu0 %v774, 110
      %v832 = vpop.permute.xlu0 %831
      %833 = vrot.lane.b32.xlu0 %v775, 110
      %v834 = vpop.permute.xlu0 %833
      %835 = vrot.lane.b32.xlu0 %v776, 110
      %v836 = vpop.permute.xlu0 %835
      %v837 = vsel %vm376, %v830, %v832
      %v838 = vsel %vm376, %v834, %v836
      %841 = vrot.lane.b32.xlu0 %v773, 96
      %v842 = vpop.permute.xlu0 %841
      %843 = vrot.lane.b32.xlu0 %v774, 96
      %v844 = vpop.permute.xlu0 %843
      %845 = vrot.lane.b32.xlu0 %v775, 96
      %v846 = vpop.permute.xlu0 %845
      %847 = vrot.lane.b32.xlu0 %v776, 96
      %v848 = vpop.permute.xlu0 %847
      %v849 = vsel %vm382, %v842, %v844
      %v850 = vsel %vm382, %v846, %v848
      %853 = vrot.lane.b32.xlu0 %v773, 95
      %v854 = vpop.permute.xlu0 %853
      %855 = vrot.lane.b32.xlu0 %v774, 95
      %v856 = vpop.permute.xlu0 %855
      %857 = vrot.lane.b32.xlu0 %v775, 95
      %v858 = vpop.permute.xlu0 %857
      %859 = vrot.lane.b32.xlu0 %v776, 95
      %v860 = vpop.permute.xlu0 %859
      %v861 = vsel %vm388, %v854, %v856
      %v862 = vsel %vm388, %v858, %v860
      %865 = vrot.lane.b32.xlu0 %v773, 94
      %v866 = vpop.permute.xlu0 %865
      %867 = vrot.lane.b32.xlu0 %v774, 94
      %v868 = vpop.permute.xlu0 %867
      %869 = vrot.lane.b32.xlu0 %v775, 94
      %v870 = vpop.permute.xlu0 %869
      %871 = vrot.lane.b32.xlu0 %v776, 94
      %v872 = vpop.permute.xlu0 %871
      %v873 = vsel %vm394, %v866, %v868
      %v874 = vsel %vm394, %v870, %v872
      %878 = vset.pattern.permute.xlu0 0
      %879 = vperm.xlu0 %878, %v749
      %v880 = vpop.permute.xlu0 %879
      %883 = vset.pattern.permute.xlu0 0
      %884 = vperm.xlu0 %883, %v750
      %v885 = vpop.permute.xlu0 %884
      %888 = vset.pattern.permute.xlu0 0
      %889 = vperm.xlu0 %888, %v751
      %v890 = vpop.permute.xlu0 %889
      %893 = vset.pattern.permute.xlu0 0
      %894 = vperm.xlu0 %893, %v752
      %v895 = vpop.permute.xlu0 %894
      %898 = vset.pattern.permute.xlu0 0
      %899 = vperm.xlu0 %898, %v753
      %v900 = vpop.permute.xlu0 %899
      %903 = vset.pattern.permute.xlu0 0
      %904 = vperm.xlu0 %903, %v754
      %v905 = vpop.permute.xlu0 %904
      %908 = vset.pattern.permute.xlu0 0
      %909 = vperm.xlu0 %908, %v755
      %v910 = vpop.permute.xlu0 %909
      %913 = vset.pattern.permute.xlu0 0
      %914 = vperm.xlu0 %913, %v756
      %v915 = vpop.permute.xlu0 %914
      %v933 = vunpack.c.l.b16 %v733
      %v934 = vunpack.c.h.b16 %v733
      %v935 = vunpack.c.l.b16 %v734
      %v936 = vunpack.c.l.b16 %v735
      %v937 = vunpack.c.h.b16 %v735
      %v938 = vunpack.c.l.b16 %v736
      %v939 = vunpack.c.l.b16 %v737
      %v940 = vunpack.c.h.b16 %v737
      %v941 = vunpack.c.l.b16 %v738
      %v942 = vunpack.c.l.b16 %v739
      %v943 = vunpack.c.h.b16 %v739
      %v944 = vunpack.c.l.b16 %v740
      %v945 = vunpack.c.l.b16 %v741
      %v946 = vunpack.c.h.b16 %v741
      %v947 = vunpack.c.l.b16 %v742
      %v948 = vunpack.c.l.b16 %v743
      %v949 = vunpack.c.h.b16 %v743
      %v950 = vunpack.c.l.b16 %v744
      %v951 = vunpack.c.l.b16 %v745
      %v952 = vunpack.c.h.b16 %v745
      %v953 = vunpack.c.l.b16 %v746
      %v954 = vunpack.c.l.b16 %v747
      %v955 = vunpack.c.h.b16 %v747
      %v956 = vunpack.c.l.b16 %v748
      %v957 = vpack.c.b16 %v936, %v933
      %v958 = vpack.c.b16 %v937, %v934
      %v959 = vpack.c.b16 %v938, %v935
      %v960 = vpack.c.b16 %v942, %v939
      %v961 = vpack.c.b16 %v943, %v940
      %v962 = vpack.c.b16 %v944, %v941
      %v963 = vpack.c.b16 %v948, %v945
      %v964 = vpack.c.b16 %v949, %v946
      %v965 = vpack.c.b16 %v950, %v947
      %v966 = vpack.c.b16 %v954, %v951
      %v967 = vpack.c.b16 %v955, %v952
      %v968 = vpack.c.b16 %v956, %v953
      %vm977 = vcmask 261120
      %v979 = vsel %vm977, %v959, 0
      %v982 = vsel %vm977, %v962, 0
      %v985 = vsel %vm977, %v965, 0
      %v988 = vsel %vm977, %v968, 0
      %990 = vmatpush.bf16.msra.mxu0 %v814
      %991 = vmatpush.bf16.msra.mxu0 %v813
      %992 = vmatpush.bf16.msra.mxu0 %v802
      %993 = vmatpush.bf16.msra.mxu0 %v801
      %994 = vmatpush.bf16.msra.mxu0 %v790
      %995 = vmatpush.bf16.msra.mxu0 %v789
      %996 = vmatpush.bf16.msra.mxu0 %v775
      %997 = vmatpush.bf16.msra.mxu0 %v773
      %998 = vmatmul.bf16.gmra.mxu0 %v957
      %v999 = vpop.f32.mrf.mxu0
      %v1000 = vadd.f32 %v880, %v999
      %v1001 = vpop.f32.mrf.mxu0
      %v1002 = vadd.f32 %v885, %v1001
      %1003 = vmatmul.bf16.gmra.mxu0 %v960
      %v1004 = vpop.f32.mrf.mxu0
      %v1005 = vadd.f32 %v890, %v1004
      %v1006 = vpop.f32.mrf.mxu0
      %v1007 = vadd.f32 %v895, %v1006
      %1008 = vmatmul.bf16.gmra.mxu0 %v963
      %v1009 = vpop.f32.mrf.mxu0
      %v1010 = vadd.f32 %v900, %v1009
      %v1011 = vpop.f32.mrf.mxu0
      %v1012 = vadd.f32 %v905, %v1011
      %1013 = vmatmul.bf16.gmra.mxu0 %v966
      %v1014 = vpop.f32.mrf.mxu0
      %v1015 = vadd.f32 %v910, %v1014
      %v1016 = vpop.f32.mrf.mxu0
      %v1017 = vadd.f32 %v915, %v1016
      %1018 = vdwg.mxu0
      %1019 = vmatpush.bf16.msra.mxu0 %v862
      %1020 = vmatpush.bf16.msra.mxu0 %v861
      %1021 = vmatpush.bf16.msra.mxu0 %v850
      %1022 = vmatpush.bf16.msra.mxu0 %v849
      %1023 = vmatpush.bf16.msra.mxu0 %v838
      %1024 = vmatpush.bf16.msra.mxu0 %v837
      %1025 = vmatpush.bf16.msra.mxu0 %v826
      %1026 = vmatpush.bf16.msra.mxu0 %v825
      %1027 = vmatmul.bf16.gmra.mxu0 %v958
      %v1028 = vpop.f32.mrf.mxu0
      %v1029 = vadd.f32 %v1000, %v1028
      %v1030 = vpop.f32.mrf.mxu0
      %v1031 = vadd.f32 %v1002, %v1030
      %1032 = vmatmul.bf16.gmra.mxu0 %v961
      %v1033 = vpop.f32.mrf.mxu0
      %v1034 = vadd.f32 %v1005, %v1033
      %v1035 = vpop.f32.mrf.mxu0
      %v1036 = vadd.f32 %v1007, %v1035
      %1037 = vmatmul.bf16.gmra.mxu0 %v964
      %v1038 = vpop.f32.mrf.mxu0
      %v1039 = vadd.f32 %v1010, %v1038
      %v1040 = vpop.f32.mrf.mxu0
      %v1041 = vadd.f32 %v1012, %v1040
      %1042 = vmatmul.bf16.gmra.mxu0 %v967
      %v1043 = vpop.f32.mrf.mxu0
      %v1044 = vadd.f32 %v1015, %v1043
      %v1045 = vpop.f32.mrf.mxu0
      %v1046 = vadd.f32 %v1017, %v1045
      %1047 = vdwg.mxu0
      %1048 = vmatpush.bf16.msra.mxu0 0
      %1049 = vmatpush.bf16.msra.mxu0 0
      %1050 = vmatpush.bf16.msra.mxu0 0
      %1051 = vmatpush.bf16.msra.mxu0 0
      %1052 = vmatpush.bf16.msra.mxu0 0
      %1053 = vmatpush.bf16.msra.mxu0 0
      %1054 = vmatpush.bf16.msra.mxu0 %v874
      %1055 = vmatpush.bf16.msra.mxu0 %v873
      %1056 = vmatmul.bf16.gmra.mxu0 %v979
      %v1057 = vpop.f32.mrf.mxu0
      %v1058 = vadd.f32 %v1029, %v1057
      %v1059 = vpop.f32.mrf.mxu0
      %v1060 = vadd.f32 %v1031, %v1059
      %1061 = vmatmul.bf16.gmra.mxu0 %v982
      %v1062 = vpop.f32.mrf.mxu0
      %v1063 = vadd.f32 %v1034, %v1062
      %v1064 = vpop.f32.mrf.mxu0
      %v1065 = vadd.f32 %v1036, %v1064
      %1066 = vmatmul.bf16.gmra.mxu0 %v985
      %v1067 = vpop.f32.mrf.mxu0
      %v1068 = vadd.f32 %v1039, %v1067
      %v1069 = vpop.f32.mrf.mxu0
      %v1070 = vadd.f32 %v1041, %v1069
      %1071 = vmatmul.bf16.gmra.mxu0 %v988
      %v1072 = vpop.f32.mrf.mxu0
      %v1073 = vadd.f32 %v1044, %v1072
      %v1074 = vpop.f32.mrf.mxu0
      %v1075 = vadd.f32 %v1046, %v1074
      %1076 = vdwg.mxu0
      %v1077 = vmax.f32 %v1058, 0.0
      %v1078 = vmax.f32 %v1060, 0.0
      %v1079 = vmax.f32 %v1063, 0.0
      %v1080 = vmax.f32 %v1065, 0.0
      %v1081 = vmax.f32 %v1068, 0.0
      %v1082 = vmax.f32 %v1070, 0.0
      %v1083 = vmax.f32 %v1073, 0.0
      %v1084 = vmax.f32 %v1075, 0.0
      %v1085 = vsel %vm352, %v784, %v668
      %v1086 = vsel %vm352, %v788, %v668
      %v1089 = vsel %vm358, %v796, %v457
      %v1090 = vsel %vm358, %v800, %v457
      %v1093 = vsel %vm364, %v808, %v674
      %v1094 = vsel %vm364, %v812, %v674
      %v1097 = vsel %vm370, %v820, %v463
      %v1098 = vsel %vm370, %v824, %v463
      %v1101 = vsel %vm376, %v832, %v680
      %v1102 = vsel %vm376, %v836, %v680
      %v1105 = vsel %vm382, %v844, %v469
      %v1106 = vsel %vm382, %v848, %v469
      %v1109 = vsel %vm388, %v856, %v686
      %v1110 = vsel %vm388, %v860, %v686
      %v1113 = vsel %vm394, %v868, %v475
      %v1114 = vsel %vm394, %v872, %v475
      %1117 = vmatpush.bf16.msra.mxu0 %v1094
      %1118 = vmatpush.bf16.msra.mxu0 %v1093
      %1119 = vmatpush.bf16.msra.mxu0 %v1090
      %1120 = vmatpush.bf16.msra.mxu0 %v1089
      %1121 = vmatpush.bf16.msra.mxu0 %v1086
      %1122 = vmatpush.bf16.msra.mxu0 %v1085
      %1123 = vmatpush.bf16.msra.mxu0 %v776
      %1124 = vmatpush.bf16.msra.mxu0 %v774
      %1125 = vmatmul.bf16.gmra.mxu0 %v957
      %v1126 = vpop.f32.mrf.mxu0
      %v1127 = vadd.f32 %v880, %v1126
      %v1128 = vpop.f32.mrf.mxu0
      %v1129 = vadd.f32 %v885, %v1128
      %1130 = vmatmul.bf16.gmra.mxu0 %v960
      %v1131 = vpop.f32.mrf.mxu0
      %v1132 = vadd.f32 %v890, %v1131
      %v1133 = vpop.f32.mrf.mxu0
      %v1134 = vadd.f32 %v895, %v1133
      %1135 = vmatmul.bf16.gmra.mxu0 %v963
      %v1136 = vpop.f32.mrf.mxu0
      %v1137 = vadd.f32 %v900, %v1136
      %v1138 = vpop.f32.mrf.mxu0
      %v1139 = vadd.f32 %v905, %v1138
      %1140 = vmatmul.bf16.gmra.mxu0 %v966
      %v1141 = vpop.f32.mrf.mxu0
      %v1142 = vadd.f32 %v910, %v1141
      %v1143 = vpop.f32.mrf.mxu0
      %v1144 = vadd.f32 %v915, %v1143
      %1145 = vdwg.mxu0
      %1146 = vmatpush.bf16.msra.mxu0 %v1110
      %1147 = vmatpush.bf16.msra.mxu0 %v1109
      %1148 = vmatpush.bf16.msra.mxu0 %v1106
      %1149 = vmatpush.bf16.msra.mxu0 %v1105
      %1150 = vmatpush.bf16.msra.mxu0 %v1102
      %1151 = vmatpush.bf16.msra.mxu0 %v1101
      %1152 = vmatpush.bf16.msra.mxu0 %v1098
      %1153 = vmatpush.bf16.msra.mxu0 %v1097
      %1154 = vmatmul.bf16.gmra.mxu0 %v958
      %v1155 = vpop.f32.mrf.mxu0
      %v1156 = vadd.f32 %v1127, %v1155
      %v1157 = vpop.f32.mrf.mxu0
      %v1158 = vadd.f32 %v1129, %v1157
      %1159 = vmatmul.bf16.gmra.mxu0 %v961
      %v1160 = vpop.f32.mrf.mxu0
      %v1161 = vadd.f32 %v1132, %v1160
      %v1162 = vpop.f32.mrf.mxu0
      %v1163 = vadd.f32 %v1134, %v1162
      %1164 = vmatmul.bf16.gmra.mxu0 %v964
      %v1165 = vpop.f32.mrf.mxu0
      %v1166 = vadd.f32 %v1137, %v1165
      %v1167 = vpop.f32.mrf.mxu0
      %v1168 = vadd.f32 %v1139, %v1167
      %1169 = vmatmul.bf16.gmra.mxu0 %v967
      %v1170 = vpop.f32.mrf.mxu0
      %v1171 = vadd.f32 %v1142, %v1170
      %v1172 = vpop.f32.mrf.mxu0
      %v1173 = vadd.f32 %v1144, %v1172
      %1174 = vdwg.mxu0
      %1175 = vmatpush.bf16.msra.mxu0 0
      %1176 = vmatpush.bf16.msra.mxu0 0
      %1177 = vmatpush.bf16.msra.mxu0 0
      %1178 = vmatpush.bf16.msra.mxu0 0
      %1179 = vmatpush.bf16.msra.mxu0 0
      %1180 = vmatpush.bf16.msra.mxu0 0
      %1181 = vmatpush.bf16.msra.mxu0 %v1114
      %1182 = vmatpush.bf16.msra.mxu0 %v1113
      %1183 = vmatmul.bf16.gmra.mxu0 %v979
      %v1184 = vpop.f32.mrf.mxu0
      %v1185 = vadd.f32 %v1156, %v1184
      %v1186 = vpop.f32.mrf.mxu0
      %v1187 = vadd.f32 %v1158, %v1186
      %1188 = vmatmul.bf16.gmra.mxu0 %v982
      %v1189 = vpop.f32.mrf.mxu0
      %v1190 = vadd.f32 %v1161, %v1189
      %v1191 = vpop.f32.mrf.mxu0
      %v1192 = vadd.f32 %v1163, %v1191
      %1193 = vmatmul.bf16.gmra.mxu0 %v985
      %v1194 = vpop.f32.mrf.mxu0
      %v1195 = vadd.f32 %v1166, %v1194
      %v1196 = vpop.f32.mrf.mxu0
      %v1197 = vadd.f32 %v1168, %v1196
      %1198 = vmatmul.bf16.gmra.mxu0 %v988
      %v1199 = vpop.f32.mrf.mxu0
      %v1200 = vadd.f32 %v1171, %v1199
      %v1201 = vpop.f32.mrf.mxu0
      %v1202 = vadd.f32 %v1173, %v1201
      %1203 = vdwg.mxu0
      %v1204 = vmax.f32 %v1185, 0.0
      %v1205 = vmax.f32 %v1187, 0.0
      %v1206 = vmax.f32 %v1190, 0.0
      %v1207 = vmax.f32 %v1192, 0.0
      %v1208 = vmax.f32 %v1195, 0.0
      %v1209 = vmax.f32 %v1197, 0.0
      %v1210 = vmax.f32 %v1200, 0.0
      %v1211 = vmax.f32 %v1202, 0.0
      %v1212 = vld [vmem:[%s7] sm:$0xff]
      %v1213 = vld [vmem:[%s7 + $0x8] sm:$0xff]
      %v1214 = vld [vmem:[%s7 + $0x10] sm:$0xf]
      %v1215 = vld [vmem:[%s7 + $0x14] sm:$0xff]
      %v1216 = vld [vmem:[%s7 + $0x1c] sm:$0xff]
      %v1217 = vld [vmem:[%s7 + $0x24] sm:$0xf]
      %v1218 = vld [vmem:[%s8] sm:$0xff]
      %v1219 = vld [vmem:[%s8 + $0x8] sm:$0xff]
      %v1220 = vpack.c.bf16 %v1204, %v1077
      %v1221 = vpack.c.bf16 %v1205, %v1078
      %v1222 = vpack.c.bf16 %v1206, %v1079
      %v1223 = vpack.c.bf16 %v1207, %v1080
      %v1224 = vpack.c.bf16 %v1208, %v1081
      %v1225 = vpack.c.bf16 %v1209, %v1082
      %v1226 = vpack.c.bf16 %v1210, %v1083
      %v1227 = vpack.c.bf16 %v1211, %v1084
      %v1236 = vunpack.c.l.b16 %v1220
      %v1237 = vunpack.c.h.b16 %v1220
      %v1238 = vunpack.c.l.b16 %v1221
      %v1239 = vunpack.c.h.b16 %v1221
      %v1240 = vunpack.c.l.b16 %v1222
      %v1241 = vunpack.c.h.b16 %v1222
      %v1242 = vunpack.c.l.b16 %v1223
      %v1243 = vunpack.c.h.b16 %v1223
      %v1244 = vunpack.c.l.b16 %v1224
      %v1245 = vunpack.c.h.b16 %v1224
      %v1246 = vunpack.c.l.b16 %v1225
      %v1247 = vunpack.c.h.b16 %v1225
      %v1248 = vunpack.c.l.b16 %v1226
      %v1249 = vunpack.c.h.b16 %v1226
      %v1250 = vunpack.c.l.b16 %v1227
      %v1251 = vunpack.c.h.b16 %v1227
      %v1252 = vpack.c.b16 %v1238, %v1236
      %v1253 = vpack.c.b16 %v1239, %v1237
      %v1254 = vpack.c.b16 %v1242, %v1240
      %v1255 = vpack.c.b16 %v1243, %v1241
      %v1256 = vpack.c.b16 %v1246, %v1244
      %v1257 = vpack.c.b16 %v1247, %v1245
      %v1258 = vpack.c.b16 %v1250, %v1248
      %v1259 = vpack.c.b16 %v1251, %v1249
      %1264 = vrot.lane.b32.xlu0 %v1252, 127
      %v1265 = vpop.permute.xlu0 %1264
      %1266 = vrot.lane.b32.xlu0 %v1253, 127
      %v1267 = vpop.permute.xlu0 %1266
      %1268 = vrot.lane.b32.xlu0 %v1254, 127
      %v1269 = vpop.permute.xlu0 %1268
      %1270 = vrot.lane.b32.xlu0 %v1255, 127
      %v1271 = vpop.permute.xlu0 %1270
      %1272 = vrot.lane.b32.xlu0 %v1256, 127
      %v1273 = vpop.permute.xlu0 %1272
      %1274 = vrot.lane.b32.xlu0 %v1257, 127
      %v1275 = vpop.permute.xlu0 %1274
      %1276 = vrot.lane.b32.xlu0 %v1258, 127
      %v1277 = vpop.permute.xlu0 %1276
      %1278 = vrot.lane.b32.xlu0 %v1259, 127
      %v1279 = vpop.permute.xlu0 %1278
      %v1280 = vsel %vm352, %v1265, %v1267
      %v1281 = vsel %vm352, %v1269, %v1271
      %v1282 = vsel %vm352, %v1273, %v1275
      %v1283 = vsel %vm352, %v1277, %v1279
      %1288 = vrot.lane.b32.xlu0 %v1252, 126
      %v1289 = vpop.permute.xlu0 %1288
      %1290 = vrot.lane.b32.xlu0 %v1253, 126
      %v1291 = vpop.permute.xlu0 %1290
      %1292 = vrot.lane.b32.xlu0 %v1254, 126
      %v1293 = vpop.permute.xlu0 %1292
      %1294 = vrot.lane.b32.xlu0 %v1255, 126
      %v1295 = vpop.permute.xlu0 %1294
      %1296 = vrot.lane.b32.xlu0 %v1256, 126
      %v1297 = vpop.permute.xlu0 %1296
      %1298 = vrot.lane.b32.xlu0 %v1257, 126
      %v1299 = vpop.permute.xlu0 %1298
      %1300 = vrot.lane.b32.xlu0 %v1258, 126
      %v1301 = vpop.permute.xlu0 %1300
      %1302 = vrot.lane.b32.xlu0 %v1259, 126
      %v1303 = vpop.permute.xlu0 %1302
      %v1304 = vsel %vm358, %v1289, %v1291
      %v1305 = vsel %vm358, %v1293, %v1295
      %v1306 = vsel %vm358, %v1297, %v1299
      %v1307 = vsel %vm358, %v1301, %v1303
      %1312 = vrot.lane.b32.xlu0 %v1252, 112
      %v1313 = vpop.permute.xlu0 %1312
      %1314 = vrot.lane.b32.xlu0 %v1253, 112
      %v1315 = vpop.permute.xlu0 %1314
      %1316 = vrot.lane.b32.xlu0 %v1254, 112
      %v1317 = vpop.permute.xlu0 %1316
      %1318 = vrot.lane.b32.xlu0 %v1255, 112
      %v1319 = vpop.permute.xlu0 %1318
      %1320 = vrot.lane.b32.xlu0 %v1256, 112
      %v1321 = vpop.permute.xlu0 %1320
      %1322 = vrot.lane.b32.xlu0 %v1257, 112
      %v1323 = vpop.permute.xlu0 %1322
      %1324 = vrot.lane.b32.xlu0 %v1258, 112
      %v1325 = vpop.permute.xlu0 %1324
      %1326 = vrot.lane.b32.xlu0 %v1259, 112
      %v1327 = vpop.permute.xlu0 %1326
      %v1328 = vsel %vm364, %v1313, %v1315
      %v1329 = vsel %vm364, %v1317, %v1319
      %v1330 = vsel %vm364, %v1321, %v1323
      %v1331 = vsel %vm364, %v1325, %v1327
      %1336 = vrot.lane.b32.xlu0 %v1252, 111
      %v1337 = vpop.permute.xlu0 %1336
      %1338 = vrot.lane.b32.xlu0 %v1253, 111
      %v1339 = vpop.permute.xlu0 %1338
      %1340 = vrot.lane.b32.xlu0 %v1254, 111
      %v1341 = vpop.permute.xlu0 %1340
      %1342 = vrot.lane.b32.xlu0 %v1255, 111
      %v1343 = vpop.permute.xlu0 %1342
      %1344 = vrot.lane.b32.xlu0 %v1256, 111
      %v1345 = vpop.permute.xlu0 %1344
      %1346 = vrot.lane.b32.xlu0 %v1257, 111
      %v1347 = vpop.permute.xlu0 %1346
      %1348 = vrot.lane.b32.xlu0 %v1258, 111
      %v1349 = vpop.permute.xlu0 %1348
      %1350 = vrot.lane.b32.xlu0 %v1259, 111
      %v1351 = vpop.permute.xlu0 %1350
      %v1352 = vsel %vm370, %v1337, %v1339
      %v1353 = vsel %vm370, %v1341, %v1343
      %v1354 = vsel %vm370, %v1345, %v1347
      %v1355 = vsel %vm370, %v1349, %v1351
      %1360 = vrot.lane.b32.xlu0 %v1252, 110
      %v1361 = vpop.permute.xlu0 %1360
      %1362 = vrot.lane.b32.xlu0 %v1253, 110
      %v1363 = vpop.permute.xlu0 %1362
      %1364 = vrot.lane.b32.xlu0 %v1254, 110
      %v1365 = vpop.permute.xlu0 %1364
      %1366 = vrot.lane.b32.xlu0 %v1255, 110
      %v1367 = vpop.permute.xlu0 %1366
      %1368 = vrot.lane.b32.xlu0 %v1256, 110
      %v1369 = vpop.permute.xlu0 %1368
      %1370 = vrot.lane.b32.xlu0 %v1257, 110
      %v1371 = vpop.permute.xlu0 %1370
      %1372 = vrot.lane.b32.xlu0 %v1258, 110
      %v1373 = vpop.permute.xlu0 %1372
      %1374 = vrot.lane.b32.xlu0 %v1259, 110
      %v1375 = vpop.permute.xlu0 %1374
      %v1376 = vsel %vm376, %v1361, %v1363
      %v1377 = vsel %vm376, %v1365, %v1367
      %v1378 = vsel %vm376, %v1369, %v1371
      %v1379 = vsel %vm376, %v1373, %v1375
      %1384 = vrot.lane.b32.xlu0 %v1252, 96
      %v1385 = vpop.permute.xlu0 %1384
      %1386 = vrot.lane.b32.xlu0 %v1253, 96
      %v1387 = vpop.permute.xlu0 %1386
      %1388 = vrot.lane.b32.xlu0 %v1254, 96
      %v1389 = vpop.permute.xlu0 %1388
      %1390 = vrot.lane.b32.xlu0 %v1255, 96
      %v1391 = vpop.permute.xlu0 %1390
      %1392 = vrot.lane.b32.xlu0 %v1256, 96
      %v1393 = vpop.permute.xlu0 %1392
      %1394 = vrot.lane.b32.xlu0 %v1257, 96
      %v1395 = vpop.permute.xlu0 %1394
      %1396 = vrot.lane.b32.xlu0 %v1258, 96
      %v1397 = vpop.permute.xlu0 %1396
      %1398 = vrot.lane.b32.xlu0 %v1259, 96
      %v1399 = vpop.permute.xlu0 %1398
      %v1400 = vsel %vm382, %v1385, %v1387
      %v1401 = vsel %vm382, %v1389, %v1391
      %v1402 = vsel %vm382, %v1393, %v1395
      %v1403 = vsel %vm382, %v1397, %v1399
      %1408 = vrot.lane.b32.xlu0 %v1252, 95
      %v1409 = vpop.permute.xlu0 %1408
      %1410 = vrot.lane.b32.xlu0 %v1253, 95
      %v1411 = vpop.permute.xlu0 %1410
      %1412 = vrot.lane.b32.xlu0 %v1254, 95
      %v1413 = vpop.permute.xlu0 %1412
      %1414 = vrot.lane.b32.xlu0 %v1255, 95
      %v1415 = vpop.permute.xlu0 %1414
      %1416 = vrot.lane.b32.xlu0 %v1256, 95
      %v1417 = vpop.permute.xlu0 %1416
      %1418 = vrot.lane.b32.xlu0 %v1257, 95
      %v1419 = vpop.permute.xlu0 %1418
      %1420 = vrot.lane.b32.xlu0 %v1258, 95
      %v1421 = vpop.permute.xlu0 %1420
      %1422 = vrot.lane.b32.xlu0 %v1259, 95
      %v1423 = vpop.permute.xlu0 %1422
      %v1424 = vsel %vm388, %v1409, %v1411
      %v1425 = vsel %vm388, %v1413, %v1415
      %v1426 = vsel %vm388, %v1417, %v1419
      %v1427 = vsel %vm388, %v1421, %v1423
      %1432 = vrot.lane.b32.xlu0 %v1252, 94
      %v1433 = vpop.permute.xlu0 %1432
      %1434 = vrot.lane.b32.xlu0 %v1253, 94
      %v1435 = vpop.permute.xlu0 %1434
      %1436 = vrot.lane.b32.xlu0 %v1254, 94
      %v1437 = vpop.permute.xlu0 %1436
      %1438 = vrot.lane.b32.xlu0 %v1255, 94
      %v1439 = vpop.permute.xlu0 %1438
      %1440 = vrot.lane.b32.xlu0 %v1256, 94
      %v1441 = vpop.permute.xlu0 %1440
      %1442 = vrot.lane.b32.xlu0 %v1257, 94
      %v1443 = vpop.permute.xlu0 %1442
      %1444 = vrot.lane.b32.xlu0 %v1258, 94
      %v1445 = vpop.permute.xlu0 %1444
      %1446 = vrot.lane.b32.xlu0 %v1259, 94
      %v1447 = vpop.permute.xlu0 %1446
      %v1448 = vsel %vm394, %v1433, %v1435
      %v1449 = vsel %vm394, %v1437, %v1439
      %v1450 = vsel %vm394, %v1441, %v1443
      %v1451 = vsel %vm394, %v1445, %v1447
      %1457 = vset.pattern.permute.xlu0 0
      %1458 = vperm.xlu0 %1457, %v1218
      %v1459 = vpop.permute.xlu0 %1458
      %1462 = vset.pattern.permute.xlu0 0
      %1463 = vperm.xlu0 %1462, %v1219
      %v1464 = vpop.permute.xlu0 %1463
      %v1472 = vunpack.c.l.b16 %v1212
      %v1473 = vunpack.c.h.b16 %v1212
      %v1474 = vunpack.c.l.b16 %v1213
      %v1475 = vunpack.c.h.b16 %v1213
      %v1476 = vunpack.c.l.b16 %v1214
      %v1477 = vunpack.c.l.b16 %v1215
      %v1478 = vunpack.c.h.b16 %v1215
      %v1479 = vunpack.c.l.b16 %v1216
      %v1480 = vunpack.c.h.b16 %v1216
      %v1481 = vunpack.c.l.b16 %v1217
      %v1482 = vpack.c.b16 %v1477, %v1472
      %v1483 = vpack.c.b16 %v1478, %v1473
      %v1484 = vpack.c.b16 %v1479, %v1474
      %v1485 = vpack.c.b16 %v1480, %v1475
      %v1486 = vpack.c.b16 %v1481, %v1476
      %vm1491 = vcmask 523264
      %v1493 = vsel %vm1491, %v1486, 0
      %1495 = vmatpush.bf16.msra.mxu0 %v1283
      %1496 = vmatpush.bf16.msra.mxu0 %v1282
      %1497 = vmatpush.bf16.msra.mxu0 %v1281
      %1498 = vmatpush.bf16.msra.mxu0 %v1280
      %1499 = vmatpush.bf16.msra.mxu0 %v1258
      %1500 = vmatpush.bf16.msra.mxu0 %v1256
      %1501 = vmatpush.bf16.msra.mxu0 %v1254
      %1502 = vmatpush.bf16.msra.mxu0 %v1252
      %1503 = vmatmul.bf16.gmra.mxu0 %v1482
      %v1504 = vpop.f32.mrf.mxu0
      %v1505 = vadd.f32 %v1459, %v1504
      %v1506 = vpop.f32.mrf.mxu0
      %v1507 = vadd.f32 %v1464, %v1506
      %1508 = vdwg.mxu0
      %1509 = vmatpush.bf16.msra.mxu0 %v1331
      %1510 = vmatpush.bf16.msra.mxu0 %v1330
      %1511 = vmatpush.bf16.msra.mxu0 %v1329
      %1512 = vmatpush.bf16.msra.mxu0 %v1328
      %1513 = vmatpush.bf16.msra.mxu0 %v1307
      %1514 = vmatpush.bf16.msra.mxu0 %v1306
      %1515 = vmatpush.bf16.msra.mxu0 %v1305
      %1516 = vmatpush.bf16.msra.mxu0 %v1304
      %1517 = vmatmul.bf16.gmra.mxu0 %v1483
      %v1518 = vpop.f32.mrf.mxu0
      %v1519 = vadd.f32 %v1505, %v1518
      %v1520 = vpop.f32.mrf.mxu0
      %v1521 = vadd.f32 %v1507, %v1520
      %1522 = vdwg.mxu0
      %1523 = vmatpush.bf16.msra.mxu0 %v1379
      %1524 = vmatpush.bf16.msra.mxu0 %v1378
      %1525 = vmatpush.bf16.msra.mxu0 %v1377
      %1526 = vmatpush.bf16.msra.mxu0 %v1376
      %1527 = vmatpush.bf16.msra.mxu0 %v1355
      %1528 = vmatpush.bf16.msra.mxu0 %v1354
      %1529 = vmatpush.bf16.msra.mxu0 %v1353
      %1530 = vmatpush.bf16.msra.mxu0 %v1352
      %1531 = vmatmul.bf16.gmra.mxu0 %v1484
      %v1532 = vpop.f32.mrf.mxu0
      %v1533 = vadd.f32 %v1519, %v1532
      %v1534 = vpop.f32.mrf.mxu0
      %v1535 = vadd.f32 %v1521, %v1534
      %1536 = vdwg.mxu0
      %1537 = vmatpush.bf16.msra.mxu0 %v1427
      %1538 = vmatpush.bf16.msra.mxu0 %v1426
      %1539 = vmatpush.bf16.msra.mxu0 %v1425
      %1540 = vmatpush.bf16.msra.mxu0 %v1424
      %1541 = vmatpush.bf16.msra.mxu0 %v1403
      %1542 = vmatpush.bf16.msra.mxu0 %v1402
      %1543 = vmatpush.bf16.msra.mxu0 %v1401
      %1544 = vmatpush.bf16.msra.mxu0 %v1400
      %1545 = vmatmul.bf16.gmra.mxu0 %v1485
      %v1546 = vpop.f32.mrf.mxu0
      %v1547 = vadd.f32 %v1533, %v1546
      %v1548 = vpop.f32.mrf.mxu0
      %v1549 = vadd.f32 %v1535, %v1548
      %1550 = vdwg.mxu0
      %1551 = vmatpush.bf16.msra.mxu0 0
      %1552 = vmatpush.bf16.msra.mxu0 0
      %1553 = vmatpush.bf16.msra.mxu0 0
      %1554 = vmatpush.bf16.msra.mxu0 0
      %1555 = vmatpush.bf16.msra.mxu0 %v1451
      %1556 = vmatpush.bf16.msra.mxu0 %v1450
      %1557 = vmatpush.bf16.msra.mxu0 %v1449
      %1558 = vmatpush.bf16.msra.mxu0 %v1448
      %1559 = vmatmul.bf16.gmra.mxu0 %v1493
      %v1560 = vpop.f32.mrf.mxu0
      %v1561 = vadd.f32 %v1547, %v1560
      %v1562 = vpop.f32.mrf.mxu0
      %v1563 = vadd.f32 %v1549, %v1562
      %1564 = vdwg.mxu0
      %vm1565 = vcmask 64512
      %1566 = vst.msk [vmem:[%s332] sm:$0xff] %vm1565, %v1561
      %vm1567 = vcmask 57344
      %1568 = vst.msk [vmem:[%s332 + $0x8] sm:$0x1] %vm1567, %v1563
      %1571 = vrot.lane.b32.xlu0 %v1561, 120
      %v1572 = vpop.permute.xlu0 %1571
      %1573 = vrot.lane.b32.xlu0 %v1563, 120
      %v1574 = vpop.permute.xlu0 %1573
      %vm1577 = vcmask 130112
      %1578 = vst.msk [vmem:[%s332] sm:$0xff] %vm1577, %v1572
      %vm1579 = vcmask 122944
      %1580 = vst.msk [vmem:[%s332 + $0x8] sm:$0x1] %vm1579, %v1574
      %1581 = vrot.lane.b32.xlu0 %v1561, 112
      %v1582 = vpop.permute.xlu0 %1581
      %1583 = vrot.lane.b32.xlu0 %v1563, 112
      %v1584 = vpop.permute.xlu0 %1583
      %vm1587 = vcmask 195712
      %1588 = vst.msk [vmem:[%s332] sm:$0xff] %vm1587, %v1582
      %vm1589 = vcmask 188544
      %1590 = vst.msk [vmem:[%s332 + $0x8] sm:$0x1] %vm1589, %v1584
      %1591 = vrot.lane.b32.xlu0 %v1561, 104
      %v1592 = vpop.permute.xlu0 %1591
      %1593 = vrot.lane.b32.xlu0 %v1563, 104
      %v1594 = vpop.permute.xlu0 %1593
      %vm1597 = vcmask 261312
      %1598 = vst.msk [vmem:[%s332] sm:$0xff] %vm1597, %v1592
      %vm1599 = vcmask 254144
      %1600 = vst.msk [vmem:[%s332 + $0x8] sm:$0x1] %vm1599, %v1594
      %1601 = vrot.lane.b32.xlu0 %v1561, 96
      %v1602 = vpop.permute.xlu0 %1601
      %1603 = vrot.lane.b32.xlu0 %v1563, 96
      %v1604 = vpop.permute.xlu0 %1603
      %vm1607 = vcmask 326912
      %1608 = vst.msk [vmem:[%s332] sm:$0xff] %vm1607, %v1602
      %vm1609 = vcmask 319744
      %1610 = vst.msk [vmem:[%s332 + $0x8] sm:$0x1] %vm1609, %v1604
      %1611 = vrot.lane.b32.xlu0 %v1561, 88
      %v1612 = vpop.permute.xlu0 %1611
      %1613 = vrot.lane.b32.xlu0 %v1563, 88
      %v1614 = vpop.permute.xlu0 %1613
      %vm1617 = vcmask 392512
      %1618 = vst.msk [vmem:[%s332] sm:$0xff] %vm1617, %v1612
      %vm1619 = vcmask 385344
      %1620 = vst.msk [vmem:[%s332 + $0x8] sm:$0x1] %vm1619, %v1614
      %1621 = vrot.lane.b32.xlu0 %v1561, 80
      %v1622 = vpop.permute.xlu0 %1621
      %1623 = vrot.lane.b32.xlu0 %v1563, 80
      %v1624 = vpop.permute.xlu0 %1623
      %vm1627 = vcmask 458112
      %1628 = vst.msk [vmem:[%s332] sm:$0xff] %vm1627, %v1622
      %vm1629 = vcmask 450944
      %1630 = vst.msk [vmem:[%s332 + $0x8] sm:$0x1] %vm1629, %v1624
      %1631 = vrot.lane.b32.xlu0 %v1561, 72
      %v1632 = vpop.permute.xlu0 %1631
      %1633 = vrot.lane.b32.xlu0 %v1563, 72
      %v1634 = vpop.permute.xlu0 %1633
      %vm1637 = vcmask 523712
      %1638 = vst.msk [vmem:[%s332] sm:$0xff] %vm1637, %v1632
      %vm1639 = vcmask 516544
      %1640 = vst.msk [vmem:[%s332 + $0x8] sm:$0x1] %vm1639, %v1634
      %p1641 = scmp.lt.s32.totalorder %s20, 1
      %s1642 = scalar_select %p1641, %s20, 1
      %s1643 = smul.addr %s1642, 2
      %s1644 = smul.addr %s1643, 8
      %s1645 = scalar_lea.vmem %s9, %s1644
      // Predicated region
      $region57: #{model_forward.1} parent=55 // pred_check
        %p1646 = pneg %p232
      $region58: #{model_forward.1} parent=55 // pred_check_branch
        %1648 = sbr.rel (%p1646) target = $region60
      $region59: #{model_forward.1} parent=55 // pred_region
        _
      $region60: #{model_forward.1} parent=55 // pred_fallthru
        _
    $region56: #{model_forward.1} parent=5 // pred_fallthru
      _
    %p1649 = scmp.le.s32.totalorder 2, %s15
    // Predicated region
    $region61: #{model_forward.1} parent=5 // pred_check
      %p1650 = pneg %p1649
    $region62: #{model_forward.1} parent=5 // pred_check_branch
      %1652 = sbr.rel (%p1650) target = $region64
    $region63: #{model_forward.1} parent=5 // pred_region
      %s1653 = ssub.s32 %s15, 2
      // Predicated region
      $region65: #{model_forward.1} parent=63 // pred_check
        %p1654 = pneg %p238
      $region66: #{model_forward.1} parent=63 // pred_check_branch
        %1656 = sbr.rel (%p1654) target = $region68
      $region67: #{model_forward.1} parent=63 // pred_region
        %p1657 = scmp.lt.s32.totalorder %s21, 1
        %s1658 = scalar_select %p1657, %s21, 1
        %s1659 = smul.addr %s1658, 2
        %s1660 = smul.addr %s1659, 8
        %s1661 = scalar_lea.vmem %s9, %s1660
      $region68: #{model_forward.1} parent=63 // pred_fallthru
        _
    $region64: #{model_forward.1} parent=5 // pred_fallthru
      _
  $region6: #{model_forward.1} parent=0 // loop_footer
    %s19 = sadd.s32 1, %s15
  $region7: #{model_forward.1} parent=0 // loop_footer_branch
    %14 = sbr.rel target = $region3
  $region8: #{model_forward.1} parent=0 // loop_exit
    _

</llo_original>
